<compile_context>
chip_gen: v7x
topology: tpu7x:2x2x1
jax: 0.10.0
libtpu: 0.0.40
codegen_flags: <defaults>
</compile_context>

<pallas_src>
import functools

import jax
import jax.numpy as jnp
import numpy as np
from jax.experimental import pallas as pl
from jax.experimental.pallas import tpu as pltpu

LANE = 128


# ----------------------------------------------------------------------------
# Pallas kernel: one lightGCN propagation layer fused with the running
# layer-sum update:
#   emb_out = A @ x
#   sum_out = (sum_in + emb_out) * out_scale      (out_scale = 1/(L+1) on the
#                                                  last layer, else 1.0)
# grid = (row tiles of A, K chunks of A); the emb output block itself is the
# f32 accumulator (resident across the K axis).
# ----------------------------------------------------------------------------
def _propagate_accumulate_kernel(a_ref, x_ref, sum_ref, emb_ref, osum_ref, *,
                                 tk, out_scale):
    kk = pl.program_id(1)

    @pl.when(kk == 0)
    def _():
        emb_ref[...] = jnp.zeros_like(emb_ref)

    # x is fully resident in VMEM (constant block index); slice this K chunk.
    k0 = pl.multiple_of(kk * tk, tk)
    x_blk = x_ref[pl.ds(k0, tk), :].astype(jnp.bfloat16)
    emb_ref[...] += jnp.dot(a_ref[...], x_blk,
                            preferred_element_type=jnp.float32)

    @pl.when(kk == pl.num_programs(1) - 1)
    def _():
        osum_ref[...] = (sum_ref[...] + emb_ref[...]) * out_scale


def _pick_tiles(n, desired_tm=512, desired_tk=512, min_row_tiles=2):
    """Large HBM-friendly tiles; keep >= min_row_tiles on the parallel axis so
    v7x's two TensorCores can both be used."""
    tm = min(desired_tm, n)
    while n % tm:
        tm -= LANE
    tk = min(desired_tk, n)
    while n % tk:
        tk -= LANE
    while n // tm < min_row_tiles and tm > LANE and n % (tm // 2) == 0:
        tm //= 2
    return tm, tk


def lightgcn_propagate_accumulate(adj_bf16, x, layer_sum, *, out_scale,
                                  desired_tm=512, desired_tk=512):
    """Returns (A @ x, (layer_sum + A @ x) * out_scale)."""
    n, k = adj_bf16.shape
    _, d_pad = x.shape
    assert n % LANE == 0 and k % LANE == 0 and d_pad % LANE == 0
    tm, tk = _pick_tiles(n, desired_tm, desired_tk)

    # Explicit VMEM sizing (matters on v7x where physical VMEM is 64 MiB).
    vmem_need = (2 * tm * tk * adj_bf16.dtype.itemsize  # A tiles, dbl-buffered
                 + 2 * k * d_pad * 4                    # resident x
                 + 2 * tm * d_pad * 4                   # running-sum input
                 + 2 * 2 * tm * d_pad * 4)              # two f32 outputs
    vmem_limit = None
    if vmem_need > 12 * 1024 * 1024:
        vmem_limit = int(min(2 * vmem_need, 48 * 1024 * 1024))

    kernel = functools.partial(_propagate_accumulate_kernel,
                               tk=tk, out_scale=out_scale)
    return pl.pallas_call(
        kernel,
        out_shape=(jax.ShapeDtypeStruct((n, d_pad), jnp.float32),
                   jax.ShapeDtypeStruct((n, d_pad), jnp.float32)),
        grid_spec=pltpu.PrefetchScalarGridSpec(
            num_scalar_prefetch=0,
            grid=(n // tm, k // tk),
            in_specs=[
                pl.BlockSpec((tm, tk), lambda i, kk: (i, kk)),    # A tile (bf16)
                pl.BlockSpec((k, d_pad), lambda i, kk: (0, 0)),   # x, resident
                pl.BlockSpec((tm, d_pad), lambda i, kk: (i, 0)),  # running sum
            ],
            out_specs=[
                pl.BlockSpec((tm, d_pad), lambda i, kk: (i, 0)),  # new emb
                pl.BlockSpec((tm, d_pad), lambda i, kk: (i, 0)),  # new sum
            ],
        ),
        compiler_params=pltpu.CompilerParams(
            dimension_semantics=("parallel", "arbitrary"),
            vmem_limit_bytes=vmem_limit,
        ),
    )(adj_bf16, x, layer_sum)


# ----------------------------------------------------------------------------
# RecSysGNN forward (lightGCN variant)
# ----------------------------------------------------------------------------
def build_norm_adjacency(edge_index, num_nodes, dtype=jnp.float32):
    """Dense normalized adjacency equivalent to lightGCN's edge norm."""
    from_, to_ = edge_index[0], edge_index[1]
    deg = jnp.zeros((num_nodes,), dtype=dtype).at[to_].add(1.0)
    deg_inv_sqrt = jnp.where(deg > 0, deg ** -0.5, 0.0)
    norm = deg_inv_sqrt[from_] * deg_inv_sqrt[to_]
    adj = jnp.zeros((num_nodes, num_nodes), dtype=dtype)
    adj = adj.at[to_, from_].add(norm)
    return adj


@functools.partial(jax.jit, static_argnames=("n_layers",))
def recsys_gnn_forward(embedding_weight, edge_index, n_layers):
    """Returns (emb0, out) exactly as RecSysGNN.forward for model='lightGCN'."""
    num_nodes, emb_dim = embedding_weight.shape
    assert num_nodes % LANE == 0, "pad num_nodes to a multiple of 128"

    # bf16 adjacency halves the dominant HBM stream; accumulation stays f32.
    adj = build_norm_adjacency(edge_index, num_nodes, jnp.float32)
    adj = adj.astype(jnp.bfloat16)

    # Lane-dense embeddings: pad D up to a multiple of 128 (padded columns of
    # A @ x stay exactly zero), slice back at the end.
    d_pad = ((emb_dim + LANE - 1) // LANE) * LANE
    emb0 = embedding_weight
    x = emb0 if d_pad == emb_dim else jnp.pad(
        emb0, ((0, 0), (0, d_pad - emb_dim)))

    if n_layers == 0:
        return emb0, emb0

    inv_count = 1.0 / float(n_layers + 1)
    layer_sum = x          # layer-0 contribution to the mean
    emb = x
    for layer in range(n_layers):
        scale = inv_count if layer == n_layers - 1 else 1.0
        emb, layer_sum = lightgcn_propagate_accumulate(
            adj, emb, layer_sum, out_scale=scale)

    out = layer_sum[:, :emb_dim]
    return emb0, out


# ----------------------------------------------------------------------------
# Pure-JAX f32 reference (PyTorch semantics) for a sanity check
# ----------------------------------------------------------------------------
def recsys_gnn_reference(embedding_weight, edge_index, n_layers):
    num_nodes = embedding_weight.shape[0]
    adj = build_norm_adjacency(edge_index, num_nodes, jnp.float32)
    emb0 = embedding_weight
    embs = [emb0]
    emb = emb0
    for _ in range(n_layers):
        emb = adj @ emb
        embs.append(emb)
    out = jnp.mean(jnp.stack(embs, axis=0), axis=0)
    return emb0, out


if __name__ == "__main__":
    # Small, deterministic problem consistent with RecSysGNN.__init__
    n_users = 100
    n_items = 156
    n_nodes = n_users + n_items        # 256  (multiple of 128)
    emb_dim = 64
    n_layers = 3

    # Embedding init: nn.init.normal_(std=0.1) for non-NGCF models.
    key = jax.random.PRNGKey(0)
    embedding_weight = 0.1 * jax.random.normal(
        key, (n_nodes, emb_dim), dtype=jnp.float32)

    # Deterministic bipartite user<->item interaction graph (both directions),
    # item node ids offset by n_users (standard RecSys convention).
    users = np.arange(n_users)
    src_u, dst_i = [], []
    for m in (1, 3, 7):
        src_u.append(users)
        dst_i.append((users * m + m) % n_items + n_users)
    src_u = np.concatenate(src_u)
    dst_i = np.concatenate(dst_i)
    from_ = np.concatenate([src_u, dst_i])
    to_ = np.concatenate([dst_i, src_u])
    edge_index = jnp.asarray(np.stack([from_, to_], axis=0), dtype=jnp.int32)
    edge_attrs = jnp.ones((edge_index.shape[1],), jnp.float32)  # unused (lightGCN)

    emb0, out = recsys_gnn_forward(embedding_weight, edge_index, n_layers)
    jax.block_until_ready((emb0, out))

    # Sanity check against the f32 reference.  Tolerances are loosened because
    # the adjacency (and x inside the matmul) is bf16 with f32 accumulation.
    ref_emb0, ref_out = recsys_gnn_reference(embedding_weight, edge_index, n_layers)
    np.testing.assert_array_equal(np.asarray(emb0), np.asarray(ref_emb0))
    np.testing.assert_allclose(np.asarray(out), np.asarray(ref_out),
                               rtol=5e-2, atol=5e-3)

    print("KERNEL_OK")
</pallas_src>

<mosaic_0001>
module attributes {stable_mosaic.version = 11 : i64} {
  func.func @_propagate_accumulate_kernel(%arg0: i32, %arg1: i32, %arg2: memref<128x256xbf16, #tpu.memory_space<vmem>>, %arg3: memref<256x128xf32, #tpu.memory_space<vmem>>, %arg4: memref<128x128xf32, #tpu.memory_space<vmem>>, %arg5: memref<128x128xf32, #tpu.memory_space<vmem>>, %arg6: memref<128x128xf32, #tpu.memory_space<vmem>>) attributes {dimension_semantics = [#tpu.dimension_semantics<parallel>, #tpu.dimension_semantics<arbitrary>], iteration_bounds = array<i64: 2, 1>, scalar_prefetch = 0 : i64, scratch_operands = 0 : i64, tpu.core_type = #tpu.core_type<tc>, window_params = [{transform_indices = @transform_0, window_bounds = array<i64: 128, 256>}, {pipeline_mode = #tpu.pipeline_mode<synchronous>, transform_indices = @transform_1, window_bounds = array<i64: 256, 128>}, {transform_indices = @transform_2, window_bounds = array<i64: 128, 128>}, {transform_indices = @transform_3, window_bounds = array<i64: 128, 128>}, {transform_indices = @transform_4, window_bounds = array<i64: 128, 128>}]} {
    %c0_i32 = arith.constant 0 : i32
    %0 = arith.cmpi eq, %arg1, %c0_i32 : i32
    %1 = arith.extui %0 : i1 to i32
    %c0_i32_0 = arith.constant 0 : i32
    %2 = arith.cmpi ne, %1, %c0_i32_0 : i32
    scf.if %2 {
      %cst_9 = arith.constant 0.000000e+00 : f32
      %16 = vector.broadcast %cst_9 : f32 to vector<128x128xf32>
      %c0_10 = arith.constant 0 : index
      %c0_11 = arith.constant 0 : index
      %17 = vector.load %arg5[%c0_10, %c0_11] : memref<128x128xf32, #tpu.memory_space<vmem>>, vector<128x128xf32>
      tpu.vector_store %arg5[%c0_10, %c0_11], %16 {strides = array<i32>} : memref<128x128xf32, #tpu.memory_space<vmem>>, vector<128x128xf32>,
    } else {
    }
    %c256_i32 = arith.constant 256 : i32
    %3 = arith.muli %arg1, %c256_i32 : i32
    %4 = tpu.assume_multiple %3, 256 : i32
    %5 = arith.index_cast %4 : i32 to index
    %c0 = arith.constant 0 : index
    %6 = vector.load %arg3[%5, %c0] : memref<256x128xf32, #tpu.memory_space<vmem>>, vector<256x128xf32>
    %7 = arith.truncf %6 : vector<256x128xf32> to vector<256x128xbf16>
    %c0_1 = arith.constant 0 : index
    %c0_2 = arith.constant 0 : index
    %8 = vector.load %arg5[%c0_1, %c0_2] : memref<128x128xf32, #tpu.memory_space<vmem>>, vector<128x128xf32>
    %c0_3 = arith.constant 0 : index
    %c0_4 = arith.constant 0 : index
    %9 = vector.load %arg2[%c0_3, %c0_4] : memref<128x256xbf16, #tpu.memory_space<vmem>>, vector<128x256xbf16>
    %cst = arith.constant dense<0.000000e+00> : vector<128x128xf32>
    %10 = tpu.matmul %9, %7, %cst {dimension_numbers = #tpu.dot_dimension_numbers<[1], [0], [0], [1], [0, 0, 1, 1], [], []>} : vector<128x256xbf16>, vector<256x128xbf16>, vector<128x128xf32> -> vector<128x128xf32>
    %11 = arith.addf %8, %10 : vector<128x128xf32>
    %c0_5 = arith.constant 0 : index
    %c0_6 = arith.constant 0 : index
    %12 = vector.load %arg5[%c0_5, %c0_6] : memref<128x128xf32, #tpu.memory_space<vmem>>, vector<128x128xf32>
    tpu.vector_store %arg5[%c0_5, %c0_6], %11 {strides = array<i32>} : memref<128x128xf32, #tpu.memory_space<vmem>>, vector<128x128xf32>,
    %c0_i32_7 = arith.constant 0 : i32
    %13 = arith.cmpi eq, %arg1, %c0_i32_7 : i32
    %14 = arith.extui %13 : i1 to i32
    %c0_i32_8 = arith.constant 0 : i32
    %15 = arith.cmpi ne, %14, %c0_i32_8 : i32
    scf.if %15 {
      %c0_9 = arith.constant 0 : index
      %c0_10 = arith.constant 0 : index
      %16 = vector.load %arg4[%c0_9, %c0_10] : memref<128x128xf32, #tpu.memory_space<vmem>>, vector<128x128xf32>
      %c0_11 = arith.constant 0 : index
      %c0_12 = arith.constant 0 : index
      %17 = vector.load %arg5[%c0_11, %c0_12] : memref<128x128xf32, #tpu.memory_space<vmem>>, vector<128x128xf32>
      %18 = arith.addf %16, %17 : vector<128x128xf32>
      %cst_13 = arith.constant 1.000000e+00 : f32
      %19 = vector.broadcast %cst_13 : f32 to vector<128x128xf32>
      %20 = arith.mulf %18, %19 : vector<128x128xf32>
      %c0_14 = arith.constant 0 : index
      %c0_15 = arith.constant 0 : index
      %21 = vector.load %arg6[%c0_14, %c0_15] : memref<128x128xf32, #tpu.memory_space<vmem>>, vector<128x128xf32>
      tpu.vector_store %arg6[%c0_14, %c0_15], %20 {strides = array<i32>} : memref<128x128xf32, #tpu.memory_space<vmem>>, vector<128x128xf32>,
    } else {
    }
    return
  }
  func.func @transform_0(%arg0: i32, %arg1: i32) -> (i32, i32) {
    %c0_i32 = arith.constant 0 : i32
    return %arg0, %arg1 : i32, i32
  }
  func.func @transform_1(%arg0: i32, %arg1: i32) -> (i32, i32) {
    %c0_i32 = arith.constant 0 : i32
    %c0_i32_0 = arith.constant 0 : i32
    %c0_i32_1 = arith.constant 0 : i32
    return %c0_i32, %c0_i32_0 : i32, i32
  }
  func.func @transform_2(%arg0: i32, %arg1: i32) -> (i32, i32) {
    %c0_i32 = arith.constant 0 : i32
    %c0_i32_0 = arith.constant 0 : i32
    return %arg0, %c0_i32 : i32, i32
  }
  func.func @transform_3(%arg0: i32, %arg1: i32) -> (i32, i32) {
    %c0_i32 = arith.constant 0 : i32
    %c0_i32_0 = arith.constant 0 : i32
    return %arg0, %c0_i32 : i32, i32
  }
  func.func @transform_4(%arg0: i32, %arg1: i32) -> (i32, i32) {
    %c0_i32 = arith.constant 0 : i32
    %c0_i32_0 = arith.constant 0 : i32
    return %arg0, %c0_i32 : i32, i32
  }
}

module attributes {stable_mosaic.version = 11 : i64} {
  func.func @_propagate_accumulate_kernel(%arg0: i32, %arg1: i32, %arg2: memref<128x256xbf16, #tpu.memory_space<vmem>>, %arg3: memref<256x128xf32, #tpu.memory_space<vmem>>, %arg4: memref<128x128xf32, #tpu.memory_space<vmem>>, %arg5: memref<128x128xf32, #tpu.memory_space<vmem>>, %arg6: memref<128x128xf32, #tpu.memory_space<vmem>>) attributes {dimension_semantics = [#tpu.dimension_semantics<parallel>, #tpu.dimension_semantics<arbitrary>], iteration_bounds = array<i64: 2, 1>, scalar_prefetch = 0 : i64, scratch_operands = 0 : i64, tpu.core_type = #tpu.core_type<tc>, window_params = [{transform_indices = @transform_0, window_bounds = array<i64: 128, 256>}, {pipeline_mode = #tpu.pipeline_mode<synchronous>, transform_indices = @transform_1, window_bounds = array<i64: 256, 128>}, {transform_indices = @transform_2, window_bounds = array<i64: 128, 128>}, {transform_indices = @transform_3, window_bounds = array<i64: 128, 128>}, {transform_indices = @transform_4, window_bounds = array<i64: 128, 128>}]} {
    %c0_i32 = arith.constant 0 : i32
    %0 = arith.cmpi eq, %arg1, %c0_i32 : i32
    %1 = arith.extui %0 : i1 to i32
    %c0_i32_0 = arith.constant 0 : i32
    %2 = arith.cmpi ne, %1, %c0_i32_0 : i32
    scf.if %2 {
      %cst_9 = arith.constant 0.000000e+00 : f32
      %16 = vector.broadcast %cst_9 : f32 to vector<128x128xf32>
      %c0_10 = arith.constant 0 : index
      %c0_11 = arith.constant 0 : index
      %17 = vector.load %arg5[%c0_10, %c0_11] : memref<128x128xf32, #tpu.memory_space<vmem>>, vector<128x128xf32>
      tpu.vector_store %arg5[%c0_10, %c0_11], %16 {strides = array<i32>} : memref<128x128xf32, #tpu.memory_space<vmem>>, vector<128x128xf32>,
    } else {
    }
    %c256_i32 = arith.constant 256 : i32
    %3 = arith.muli %arg1, %c256_i32 : i32
    %4 = tpu.assume_multiple %3, 256 : i32
    %5 = arith.index_cast %4 : i32 to index
    %c0 = arith.constant 0 : index
    %6 = vector.load %arg3[%5, %c0] : memref<256x128xf32, #tpu.memory_space<vmem>>, vector<256x128xf32>
    %7 = arith.truncf %6 : vector<256x128xf32> to vector<256x128xbf16>
    %c0_1 = arith.constant 0 : index
    %c0_2 = arith.constant 0 : index
    %8 = vector.load %arg5[%c0_1, %c0_2] : memref<128x128xf32, #tpu.memory_space<vmem>>, vector<128x128xf32>
    %c0_3 = arith.constant 0 : index
    %c0_4 = arith.constant 0 : index
    %9 = vector.load %arg2[%c0_3, %c0_4] : memref<128x256xbf16, #tpu.memory_space<vmem>>, vector<128x256xbf16>
    %cst = arith.constant dense<0.000000e+00> : vector<128x128xf32>
    %10 = tpu.matmul %9, %7, %cst {dimension_numbers = #tpu.dot_dimension_numbers<[1], [0], [0], [1], [0, 0, 1, 1], [], []>} : vector<128x256xbf16>, vector<256x128xbf16>, vector<128x128xf32> -> vector<128x128xf32>
    %11 = arith.addf %8, %10 : vector<128x128xf32>
    %c0_5 = arith.constant 0 : index
    %c0_6 = arith.constant 0 : index
    %12 = vector.load %arg5[%c0_5, %c0_6] : memref<128x128xf32, #tpu.memory_space<vmem>>, vector<128x128xf32>
    tpu.vector_store %arg5[%c0_5, %c0_6], %11 {strides = array<i32>} : memref<128x128xf32, #tpu.memory_space<vmem>>, vector<128x128xf32>,
    %c0_i32_7 = arith.constant 0 : i32
    %13 = arith.cmpi eq, %arg1, %c0_i32_7 : i32
    %14 = arith.extui %13 : i1 to i32
    %c0_i32_8 = arith.constant 0 : i32
    %15 = arith.cmpi ne, %14, %c0_i32_8 : i32
    scf.if %15 {
      %c0_9 = arith.constant 0 : index
      %c0_10 = arith.constant 0 : index
      %16 = vector.load %arg4[%c0_9, %c0_10] : memref<128x128xf32, #tpu.memory_space<vmem>>, vector<128x128xf32>
      %c0_11 = arith.constant 0 : index
      %c0_12 = arith.constant 0 : index
      %17 = vector.load %arg5[%c0_11, %c0_12] : memref<128x128xf32, #tpu.memory_space<vmem>>, vector<128x128xf32>
      %18 = arith.addf %16, %17 : vector<128x128xf32>
      %cst_13 = arith.constant 2.500000e-01 : f32
      %19 = vector.broadcast %cst_13 : f32 to vector<128x128xf32>
      %20 = arith.mulf %18, %19 : vector<128x128xf32>
      %c0_14 = arith.constant 0 : index
      %c0_15 = arith.constant 0 : index
      %21 = vector.load %arg6[%c0_14, %c0_15] : memref<128x128xf32, #tpu.memory_space<vmem>>, vector<128x128xf32>
      tpu.vector_store %arg6[%c0_14, %c0_15], %20 {strides = array<i32>} : memref<128x128xf32, #tpu.memory_space<vmem>>, vector<128x128xf32>,
    } else {
    }
    return
  }
  func.func @transform_0(%arg0: i32, %arg1: i32) -> (i32, i32) {
    %c0_i32 = arith.constant 0 : i32
    return %arg0, %arg1 : i32, i32
  }
  func.func @transform_1(%arg0: i32, %arg1: i32) -> (i32, i32) {
    %c0_i32 = arith.constant 0 : i32
    %c0_i32_0 = arith.constant 0 : i32
    %c0_i32_1 = arith.constant 0 : i32
    return %c0_i32, %c0_i32_0 : i32, i32
  }
  func.func @transform_2(%arg0: i32, %arg1: i32) -> (i32, i32) {
    %c0_i32 = arith.constant 0 : i32
    %c0_i32_0 = arith.constant 0 : i32
    return %arg0, %c0_i32 : i32, i32
  }
  func.func @transform_3(%arg0: i32, %arg1: i32) -> (i32, i32) {
    %c0_i32 = arith.constant 0 : i32
    %c0_i32_0 = arith.constant 0 : i32
    return %arg0, %c0_i32 : i32, i32
  }
  func.func @transform_4(%arg0: i32, %arg1: i32) -> (i32, i32) {
    %c0_i32 = arith.constant 0 : i32
    %c0_i32_0 = arith.constant 0 : i32
    return %arg0, %c0_i32 : i32, i32
  }
}

</mosaic_0001>

<llo_original>
// kernel: mul.1
$region0: #{mul.1}
  #allocation0 [shape = 's32[1]{0}', space=sflag, size = 0x4, scoped, tag = 'scoped memory for mul.1']
  %s0 = inlined_call_operand.vmem [shape: f32[600], index: 0, kind: input, shape index: {}]
  %s1 = inlined_call_operand.vmem [shape: f32[600], index: 1, kind: input, shape index: {}]
  %s2 = inlined_call_operand.vmem [shape: f32[600], index: 2, kind: output, shape index: {}]
  %v3 = vld [vmem:[%s0] sm:$0x1f]
  %v4 = vld [vmem:[%s1] sm:$0x1f]
  %5 = xla_tuple %v3, %v4
  %6 = xla_tuple %5
  %v7 = vmul.f32 %v3, %v4
  %8 = xla_tuple %v7
  %9 = vst [vmem:[%s2] sm:$0xff] %v7

// kernel: recsys_gnn_forward.3
$region0: #{recsys_gnn_forward.3}
  #allocation0 [shape = 'u32[]', space=smem, size = 0x4, offset = 0x4, fixed_abs, tag = 'smem constant byte address 0x4 - core index']
  #allocation1 [shape = 'u32[144,128]{1,0:T(1,128)}', space=vmem, size = 0x12000, scoped, tag = 'internal scratch']
  %s0 = inlined_call_operand.vmem [shape: bf16[256,256], index: 0, kind: input, shape index: {}]
  %s1 = inlined_call_operand.vmem [shape: f32[256,128], index: 1, kind: input, shape index: {}, may-alias: {1,2}]
  %s2 = inlined_call_operand.vmem [shape: f32[256,128], index: 2, kind: input, shape index: {}, may-alias: {1,2}]
  %s3 = inlined_call_operand.vmem [shape: f32[256,128], index: 3, kind: output, shape index: {0}]
  %s4 = inlined_call_operand.vmem [shape: f32[256,128], index: 4, kind: output, shape index: {1}]
  %5 = xla_tuple %s3, %s4
  %s6 = sld [smem:[#allocation0]]
  $region61: #{recsys_gnn_forward.3} parent=0
    _
  %s8 = ssub.s32 1, %s6
  %s9 = scalar_select 0, %s8, %s6
  loop: start=0, step=1, limit=4
  $region2: #{recsys_gnn_forward.3} parent=0 // loop_pre_header
    _
  $region3: #{recsys_gnn_forward.3} parent=0 // loop_header
    %s11 = sphi 0, %s15
    %p12 = scmp.ge.s32.totalorder %s11, 4
    %s18 = sphi 0, %s30
    %s19 = sphi 0, %s26
    %s20 = sphi 0, %s18
    %s21 = sphi 0, %s19
    %s22 = sphi 0, %s20
    %s23 = sphi 0, %s21
    %s35 = sphi 0, %s37
    %s38 = sphi 0, %s35
    %s39 = sphi 0, %s38
    %s55 = sphi 0, %s39
    %s59 = sphi 0, %s59
    %s61 = sphi 0, %s59
    %s62 = sphi 0, %s61
    %s76 = sphi 0, %s62
    %s82 = sphi 0, %s84
    %s85 = sphi 0, %s82
    %s86 = sphi 0, %s85
    %s102 = sphi 0, %s86
    %s108 = sphi 0, %s110
    %s111 = sphi 0, %s108
    %s112 = sphi 0, %s111
    %s128 = sphi 0, %s112
    %s134 = sphi 0, %s136
    %s137 = sphi 0, %s134
    %s138 = sphi 0, %s137
    %s154 = sphi 0, %s138
  $region4: #{recsys_gnn_forward.3} parent=0 // loop_header_branch
    %14 = sbr.rel (%p12) target = $region8
  $region5: #{recsys_gnn_forward.3} parent=0 // loop_body
    %s16 = ssub.s32 %s11, 1
    %s17 = ssub.s32 %s11, 2
    %s24 = sadd.s32 1, %s19
    %p25 = scmp.ge.s32.totalorder %s24, 1
    %s26 = scalar_select %p25, 0, %s24
    %s27 = sadd.s32 1, %s18
    %s28 = scalar_select %p25, %s27, %s18
    %p29 = scmp.ge.s32.totalorder %s28, 2
    %s30 = scalar_select %p29, 0, %s28
    %s31 = ssub.s32 %s18, %s30
    %s32 = ssub.s32 %s19, %s26
    %s33 = sor.u32 %s31, %s32
    %p34 = scmp.eq.s32.totalorder %s33, 0
    %s36 = sadd.s32 %s35, 1
    %s37 = scalar_select %p34, %s35, %s36
    %p40 = pneg %p34
    %p41 = scmp.eq.s32.totalorder %s11, 1
    %p42 = por %p40, %p41
    %p43 = scmp.ne.s32.totalorder %s35, %s38
    %p44 = scmp.eq.s32.totalorder %s11, 0
    %p45 = por %p43, %p44
    %p46 = scmp.ne.s32.totalorder %s35, %s38
    %p47 = scmp.eq.s32.totalorder %s16, 1
    %p48 = por %p46, %p47
    %p49 = scmp.ne.s32.totalorder %s38, %s39
    %p50 = scmp.eq.s32.totalorder %s16, 0
    %p51 = por %p49, %p50
    %p52 = scmp.ne.s32.totalorder %s38, %s39
    %p53 = scmp.eq.s32.totalorder %s17, 1
    %p54 = por %p52, %p53
    %p56 = scmp.ne.s32.totalorder %s39, %s55
    %p57 = scmp.eq.s32.totalorder %s17, 0
    %p58 = por %p56, %p57
    %s60 = sadd.s32 %s59, 1
    %p63 = scmp.eq.s32.totalorder %s11, 1
    %p64 = scmp.ne.s32.totalorder %s59, %s61
    %p65 = scmp.eq.s32.totalorder %s11, 0
    %p66 = por %p64, %p65
    %p67 = scmp.ne.s32.totalorder %s59, %s61
    %p68 = scmp.eq.s32.totalorder %s16, 1
    %p69 = por %p67, %p68
    %p70 = scmp.ne.s32.totalorder %s61, %s62
    %p71 = scmp.eq.s32.totalorder %s16, 0
    %p72 = por %p70, %p71
    %p73 = scmp.ne.s32.totalorder %s61, %s62
    %p74 = scmp.eq.s32.totalorder %s17, 1
    %p75 = por %p73, %p74
    %p77 = scmp.ne.s32.totalorder %s62, %s76
    %p78 = scmp.eq.s32.totalorder %s17, 0
    %p79 = por %p77, %p78
    %s80 = ssub.s32 %s18, %s30
    %p81 = scmp.eq.s32.totalorder %s80, 0
    %s83 = sadd.s32 %s82, 1
    %s84 = scalar_select %p81, %s82, %s83
    %p87 = pneg %p81
    %p88 = scmp.eq.s32.totalorder %s11, 1
    %p89 = por %p87, %p88
    %p90 = scmp.ne.s32.totalorder %s82, %s85
    %p91 = scmp.eq.s32.totalorder %s11, 0
    %p92 = por %p90, %p91
    %p93 = scmp.ne.s32.totalorder %s82, %s85
    %p94 = scmp.eq.s32.totalorder %s16, 1
    %p95 = por %p93, %p94
    %p96 = scmp.ne.s32.totalorder %s85, %s86
    %p97 = scmp.eq.s32.totalorder %s16, 0
    %p98 = por %p96, %p97
    %p99 = scmp.ne.s32.totalorder %s85, %s86
    %p100 = scmp.eq.s32.totalorder %s17, 1
    %p101 = por %p99, %p100
    %p103 = scmp.ne.s32.totalorder %s86, %s102
    %p104 = scmp.eq.s32.totalorder %s17, 0
    %p105 = por %p103, %p104
    %s106 = ssub.s32 %s18, %s30
    %p107 = scmp.eq.s32.totalorder %s106, 0
    %s109 = sadd.s32 %s108, 1
    %s110 = scalar_select %p107, %s108, %s109
    %p113 = pneg %p107
    %p114 = scmp.eq.s32.totalorder %s11, 1
    %p115 = por %p113, %p114
    %p116 = scmp.ne.s32.totalorder %s108, %s111
    %p117 = scmp.eq.s32.totalorder %s11, 0
    %p118 = por %p116, %p117
    %p119 = scmp.ne.s32.totalorder %s108, %s111
    %p120 = scmp.eq.s32.totalorder %s16, 1
    %p121 = por %p119, %p120
    %p122 = scmp.ne.s32.totalorder %s111, %s112
    %p123 = scmp.eq.s32.totalorder %s16, 0
    %p124 = por %p122, %p123
    %p125 = scmp.ne.s32.totalorder %s111, %s112
    %p126 = scmp.eq.s32.totalorder %s17, 1
    %p127 = por %p125, %p126
    %p129 = scmp.ne.s32.totalorder %s112, %s128
    %p130 = scmp.eq.s32.totalorder %s17, 0
    %p131 = por %p129, %p130
    %s132 = ssub.s32 %s18, %s30
    %p133 = scmp.eq.s32.totalorder %s132, 0
    %s135 = sadd.s32 %s134, 1
    %s136 = scalar_select %p133, %s134, %s135
    %p139 = pneg %p133
    %p140 = scmp.eq.s32.totalorder %s11, 1
    %p141 = por %p139, %p140
    %p142 = scmp.ne.s32.totalorder %s134, %s137
    %p143 = scmp.eq.s32.totalorder %s11, 0
    %p144 = por %p142, %p143
    %p145 = scmp.ne.s32.totalorder %s134, %s137
    %p146 = scmp.eq.s32.totalorder %s16, 1
    %p147 = por %p145, %p146
    %p148 = scmp.ne.s32.totalorder %s137, %s138
    %p149 = scmp.eq.s32.totalorder %s16, 0
    %p150 = por %p148, %p149
    %p151 = scmp.ne.s32.totalorder %s137, %s138
    %p152 = scmp.eq.s32.totalorder %s17, 1
    %p153 = por %p151, %p152
    %p155 = scmp.ne.s32.totalorder %s138, %s154
    %p156 = scmp.eq.s32.totalorder %s17, 0
    %p157 = por %p155, %p156
    %p158 = scmp.le.s32.totalorder 1, %s11
    %p159 = scmp.lt.s32.totalorder %s11, 3
    %p160 = pnand %p158, %p159
    %p161 = pneg %p160
    // Predicated region
    $region9: #{recsys_gnn_forward.3} parent=5 // pred_check
      _
    $region10: #{recsys_gnn_forward.3} parent=5 // pred_check_branch
      %163 = sbr.rel (%p160) target = $region12
    $region11: #{recsys_gnn_forward.3} parent=5 // pred_region
      %s164 = ssub.s32 %s11, 1
      // Predicated region
      $region13: #{recsys_gnn_forward.3} parent=11 // pred_check
        %p165 = pneg %p72
      $region14: #{recsys_gnn_forward.3} parent=11 // pred_check_branch
        %167 = sbr.rel (%p165) target = $region16
      $region15: #{recsys_gnn_forward.3} parent=11 // pred_region
        _
      $region16: #{recsys_gnn_forward.3} parent=11 // pred_fallthru
        _
    $region12: #{recsys_gnn_forward.3} parent=5 // pred_fallthru
      _
    %p168 = scmp.lt.s32.totalorder %s11, 2
    // Predicated region
    $region17: #{recsys_gnn_forward.3} parent=5 // pred_check
      %p169 = pneg %p168
    $region18: #{recsys_gnn_forward.3} parent=5 // pred_check_branch
      %171 = sbr.rel (%p169) target = $region20
    $region19: #{recsys_gnn_forward.3} parent=5 // pred_region
      // Predicated region
      $region21: #{recsys_gnn_forward.3} parent=19 // pred_check
        %p172 = pneg %p45
      $region22: #{recsys_gnn_forward.3} parent=19 // pred_check_branch
        %174 = sbr.rel (%p172) target = $region24
      $region23: #{recsys_gnn_forward.3} parent=19 // pred_region
        %s175 = smul.u32 16, %s18
        %s176 = smul.u32 2, %s19
        %p177 = scmp.lt.s32.totalorder %s175, 31
        %s178 = scalar_select %p177, %s175, 31
        %p179 = scmp.lt.s32.totalorder %s176, 1
        %s180 = scalar_select %p179, %s176, 1
        %s181 = smul.addr %s178, 2
        %s182 = sadd.s32 %s180, %s181
        %s183 = smul.addr %s182, 4
        %s184 = scalar_lea.vmem %s0, %s183
        %s185 = smul.u32 16, %s18
        %s186 = smul.u32 2, %s19
      $region24: #{recsys_gnn_forward.3} parent=19 // pred_fallthru
        _
      // Predicated region
      $region25: #{recsys_gnn_forward.3} parent=19 // pred_check
        %p187 = pneg %p92
      $region26: #{recsys_gnn_forward.3} parent=19 // pred_check_branch
        %189 = sbr.rel (%p187) target = $region28
      $region27: #{recsys_gnn_forward.3} parent=19 // pred_region
        %s190 = smul.u32 16, %s18
        %p191 = scmp.lt.s32.totalorder %s190, 31
        %s192 = scalar_select %p191, %s190, 31
        %s193 = smul.addr %s192, 8
        %s194 = scalar_lea.vmem %s2, %s193
        %s195 = smul.u32 16, %s18
      $region28: #{recsys_gnn_forward.3} parent=19 // pred_fallthru
        _
    $region20: #{recsys_gnn_forward.3} parent=5 // pred_fallthru
      _
    %p196 = scmp.le.s32.totalorder 1, %s11
    %p197 = scmp.lt.s32.totalorder %s11, 3
    %p198 = pnand %p196, %p197
    %p199 = pneg %p198
    // Predicated region
    $region29: #{recsys_gnn_forward.3} parent=5 // pred_check
      _
    $region30: #{recsys_gnn_forward.3} parent=5 // pred_check_branch
      %201 = sbr.rel (%p198) target = $region32
    $region31: #{recsys_gnn_forward.3} parent=5 // pred_region
      %s202 = ssub.s32 %s11, 1
      %s203 = smul.u32 16, %s20
      %s204 = smul.u32 2, %s21
      %p205 = scmp.lt.s32.totalorder %s203, 31
      %s206 = scalar_select %p205, %s203, 31
      %p207 = scmp.lt.s32.totalorder %s204, 1
      %s208 = scalar_select %p207, %s204, 1
      %s209 = smul.addr %s206, 2
      %s210 = sadd.s32 %s208, %s209
      %s211 = smul.addr %s210, 4
      %s212 = scalar_lea.vmem %s0, %s211
      %p213 = pneg %p51
      %p214 = pneg %p48
      %p215 = pneg %p72
      %p216 = pneg %p69
      %s217 = smul.u32 16, %s20
      %p218 = scmp.lt.s32.totalorder %s217, 31
      %s219 = scalar_select %p218, %s217, 31
      %s220 = smul.addr %s219, 8
      %s221 = scalar_lea.vmem %s2, %s220
      %p222 = pneg %p98
      %p223 = pneg %p95
      %p224 = pneg %p124
      %p225 = pneg %p121
      %s226 = smul.u32 16, %s20
      %p227 = scmp.lt.s32.totalorder %s226, 31
      %s228 = scalar_select %p227, %s226, 31
      %s229 = smul.addr %s228, 8
      %s230 = scalar_lea.vmem %s3, %s229
      %p231 = pneg %p150
      %p232 = pneg %p147
      %s233 = smul.u32 16, %s20
      %p234 = scmp.lt.s32.totalorder %s233, 31
      %s235 = scalar_select %p234, %s233, 31
      %s236 = smul.addr %s235, 8
      %s237 = scalar_lea.vmem %s4, %s236
      %s238 = smul.u32 16, %s20
      %s239 = smul.u32 2, %s21
      %p240 = scmp.lt.s32.totalorder %s238, 31
      %s241 = scalar_select %p240, %s238, 31
      %p242 = scmp.lt.s32.totalorder %s239, 1
      %s243 = scalar_select %p242, %s239, 1
      %s244 = smul.addr %s241, 2
      %s245 = sadd.s32 %s243, %s244
      %s246 = smul.addr %s245, 4
      %s247 = scalar_lea.vmem %s0, %s246
      %s248 = smul.u32 16, %s20
      %s249 = smul.u32 2, %s21
      %s250 = smul.u32 16, %s20
      %p251 = scmp.lt.s32.totalorder %s250, 31
      %s252 = scalar_select %p251, %s250, 31
      %s253 = smul.addr %s252, 8
      %s254 = scalar_lea.vmem %s2, %s253
      %s255 = smul.u32 16, %s20
      %s256 = smul.u32 16, %s20
      %p257 = scmp.lt.s32.totalorder %s256, 31
      %s258 = scalar_select %p257, %s256, 31
      %s259 = smul.addr %s258, 8
      %s260 = scalar_lea.vmem %s3, %s259
      %s261 = smul.u32 16, %s20
      %s262 = smul.u32 16, %s20
      %p263 = scmp.lt.s32.totalorder %s262, 31
      %s264 = scalar_select %p263, %s262, 31
      %s265 = smul.addr %s264, 8
      %s266 = scalar_lea.vmem %s4, %s265
      %s267 = smul.u32 16, %s20
      %p269 = scmp.eq.s32.totalorder %s21, 0
      // Predicated region
      $region33: #{recsys_gnn_forward.3} parent=31 // pred_check
        %p270 = pneg %p269
      $region34: #{recsys_gnn_forward.3} parent=31 // pred_check_branch
        %272 = sbr.rel (%p270) target = $region36
      $region35: #{recsys_gnn_forward.3} parent=31 // pred_region
        %273 = vst [vmem:[%s260] sm:$0xff] 0.0
        %274 = vst [vmem:[%s260 + $0x8] sm:$0xff] 0.0
        %275 = vst [vmem:[%s260 + $0x10] sm:$0xff] 0.0
        %276 = vst [vmem:[%s260 + $0x18] sm:$0xff] 0.0
        %277 = vst [vmem:[%s260 + $0x20] sm:$0xff] 0.0
        %278 = vst [vmem:[%s260 + $0x28] sm:$0xff] 0.0
        %279 = vst [vmem:[%s260 + $0x30] sm:$0xff] 0.0
        %280 = vst [vmem:[%s260 + $0x38] sm:$0xff] 0.0
        %281 = vst [vmem:[%s260 + $0x40] sm:$0xff] 0.0
        %282 = vst [vmem:[%s260 + $0x48] sm:$0xff] 0.0
        %283 = vst [vmem:[%s260 + $0x50] sm:$0xff] 0.0
        %284 = vst [vmem:[%s260 + $0x58] sm:$0xff] 0.0
        %285 = vst [vmem:[%s260 + $0x60] sm:$0xff] 0.0
        %286 = vst [vmem:[%s260 + $0x68] sm:$0xff] 0.0
        %287 = vst [vmem:[%s260 + $0x70] sm:$0xff] 0.0
        %288 = vst [vmem:[%s260 + $0x78] sm:$0xff] 0.0
      $region36: #{recsys_gnn_forward.3} parent=31 // pred_fallthru
        _
      %s289 = smul.u32 %s21, 256
      %s290 = scalar_lea.vmem %s1, %s289
      %v291 = vld [vmem:[%s290] sm:$0xff]
      %v292 = vld [vmem:[%s290 + $0x8] sm:$0xff]
      %v293 = vld [vmem:[%s290 + $0x10] sm:$0xff]
      %v294 = vld [vmem:[%s290 + $0x18] sm:$0xff]
      %v295 = vld [vmem:[%s290 + $0x20] sm:$0xff]
      %v296 = vld [vmem:[%s290 + $0x28] sm:$0xff]
      %v297 = vld [vmem:[%s290 + $0x30] sm:$0xff]
      %v298 = vld [vmem:[%s290 + $0x38] sm:$0xff]
      %v299 = vld [vmem:[%s290 + $0x40] sm:$0xff]
      %v300 = vld [vmem:[%s290 + $0x48] sm:$0xff]
      %v301 = vld [vmem:[%s290 + $0x50] sm:$0xff]
      %v302 = vld [vmem:[%s290 + $0x58] sm:$0xff]
      %v303 = vld [vmem:[%s290 + $0x60] sm:$0xff]
      %v304 = vld [vmem:[%s290 + $0x68] sm:$0xff]
      %v305 = vld [vmem:[%s290 + $0x70] sm:$0xff]
      %v306 = vld [vmem:[%s290 + $0x78] sm:$0xff]
      %v307 = vld [vmem:[%s290 + $0x80] sm:$0xff]
      %v308 = vld [vmem:[%s290 + $0x88] sm:$0xff]
      %v309 = vld [vmem:[%s290 + $0x90] sm:$0xff]
      %v310 = vld [vmem:[%s290 + $0x98] sm:$0xff]
      %v311 = vld [vmem:[%s290 + $0xa0] sm:$0xff]
      %v312 = vld [vmem:[%s290 + $0xa8] sm:$0xff]
      %v313 = vld [vmem:[%s290 + $0xb0] sm:$0xff]
      %v314 = vld [vmem:[%s290 + $0xb8] sm:$0xff]
      %v315 = vld [vmem:[%s290 + $0xc0] sm:$0xff]
      %v316 = vld [vmem:[%s290 + $0xc8] sm:$0xff]
      %v317 = vld [vmem:[%s290 + $0xd0] sm:$0xff]
      %v318 = vld [vmem:[%s290 + $0xd8] sm:$0xff]
      %v319 = vld [vmem:[%s290 + $0xe0] sm:$0xff]
      %v320 = vld [vmem:[%s290 + $0xe8] sm:$0xff]
      %v321 = vld [vmem:[%s290 + $0xf0] sm:$0xff]
      %v322 = vld [vmem:[%s290 + $0xf8] sm:$0xff]
      %v323 = vpack.c.bf16 %v292, %v291
      %v324 = vpack.c.bf16 %v294, %v293
      %v325 = vpack.c.bf16 %v296, %v295
      %v326 = vpack.c.bf16 %v298, %v297
      %v327 = vpack.c.bf16 %v300, %v299
      %v328 = vpack.c.bf16 %v302, %v301
      %v329 = vpack.c.bf16 %v304, %v303
      %v330 = vpack.c.bf16 %v306, %v305
      %v331 = vpack.c.bf16 %v308, %v307
      %v332 = vpack.c.bf16 %v310, %v309
      %v333 = vpack.c.bf16 %v312, %v311
      %v334 = vpack.c.bf16 %v314, %v313
      %v335 = vpack.c.bf16 %v316, %v315
      %v336 = vpack.c.bf16 %v318, %v317
      %v337 = vpack.c.bf16 %v320, %v319
      %v338 = vpack.c.bf16 %v322, %v321
      %v339 = vld [vmem:[%s260] sm:$0xff]
      %v340 = vld [vmem:[%s260 + $0x8] sm:$0xff]
      %v341 = vld [vmem:[%s260 + $0x10] sm:$0xff]
      %v342 = vld [vmem:[%s260 + $0x18] sm:$0xff]
      %v343 = vld [vmem:[%s260 + $0x20] sm:$0xff]
      %v344 = vld [vmem:[%s260 + $0x28] sm:$0xff]
      %v345 = vld [vmem:[%s260 + $0x30] sm:$0xff]
      %v346 = vld [vmem:[%s260 + $0x38] sm:$0xff]
      %v347 = vld [vmem:[%s260 + $0x40] sm:$0xff]
      %v348 = vld [vmem:[%s260 + $0x48] sm:$0xff]
      %v349 = vld [vmem:[%s260 + $0x50] sm:$0xff]
      %v350 = vld [vmem:[%s260 + $0x58] sm:$0xff]
      %v351 = vld [vmem:[%s260 + $0x60] sm:$0xff]
      %v352 = vld [vmem:[%s260 + $0x68] sm:$0xff]
      %v353 = vld [vmem:[%s260 + $0x70] sm:$0xff]
      %v354 = vld [vmem:[%s260 + $0x78] sm:$0xff]
      %v355 = vld [vmem:[%s247] sm:$0xff]
      %v356 = vld [vmem:[%s247 + $0x8] sm:$0xff]
      %v357 = vld [vmem:[%s247 + $0x10] sm:$0xff]
      %v358 = vld [vmem:[%s247 + $0x18] sm:$0xff]
      %v359 = vld [vmem:[%s247 + $0x20] sm:$0xff]
      %v360 = vld [vmem:[%s247 + $0x28] sm:$0xff]
      %v361 = vld [vmem:[%s247 + $0x30] sm:$0xff]
      %v362 = vld [vmem:[%s247 + $0x38] sm:$0xff]
      %v363 = vld [vmem:[%s247 + $0x40] sm:$0xff]
      %v364 = vld [vmem:[%s247 + $0x48] sm:$0xff]
      %v365 = vld [vmem:[%s247 + $0x50] sm:$0xff]
      %v366 = vld [vmem:[%s247 + $0x58] sm:$0xff]
      %v367 = vld [vmem:[%s247 + $0x60] sm:$0xff]
      %v368 = vld [vmem:[%s247 + $0x68] sm:$0xff]
      %v369 = vld [vmem:[%s247 + $0x70] sm:$0xff]
      %v370 = vld [vmem:[%s247 + $0x78] sm:$0xff]
      %v387 = vunpack.c.l.b16 %v355
      %v388 = vunpack.c.h.b16 %v355
      %v389 = vunpack.c.l.b16 %v356
      %v390 = vunpack.c.h.b16 %v356
      %v391 = vunpack.c.l.b16 %v357
      %v392 = vunpack.c.h.b16 %v357
      %v393 = vunpack.c.l.b16 %v358
      %v394 = vunpack.c.h.b16 %v358
      %v395 = vunpack.c.l.b16 %v359
      %v396 = vunpack.c.h.b16 %v359
      %v397 = vunpack.c.l.b16 %v360
      %v398 = vunpack.c.h.b16 %v360
      %v399 = vunpack.c.l.b16 %v361
      %v400 = vunpack.c.h.b16 %v361
      %v401 = vunpack.c.l.b16 %v362
      %v402 = vunpack.c.h.b16 %v362
      %v403 = vunpack.c.l.b16 %v363
      %v404 = vunpack.c.h.b16 %v363
      %v405 = vunpack.c.l.b16 %v364
      %v406 = vunpack.c.h.b16 %v364
      %v407 = vunpack.c.l.b16 %v365
      %v408 = vunpack.c.h.b16 %v365
      %v409 = vunpack.c.l.b16 %v366
      %v410 = vunpack.c.h.b16 %v366
      %v411 = vunpack.c.l.b16 %v367
      %v412 = vunpack.c.h.b16 %v367
      %v413 = vunpack.c.l.b16 %v368
      %v414 = vunpack.c.h.b16 %v368
      %v415 = vunpack.c.l.b16 %v369
      %v416 = vunpack.c.h.b16 %v369
      %v417 = vunpack.c.l.b16 %v370
      %v418 = vunpack.c.h.b16 %v370
      %v419 = vpack.c.b16 %v389, %v387
      %v420 = vpack.c.b16 %v390, %v388
      %v421 = vpack.c.b16 %v393, %v391
      %v422 = vpack.c.b16 %v394, %v392
      %v423 = vpack.c.b16 %v397, %v395
      %v424 = vpack.c.b16 %v398, %v396
      %v425 = vpack.c.b16 %v401, %v399
      %v426 = vpack.c.b16 %v402, %v400
      %v427 = vpack.c.b16 %v405, %v403
      %v428 = vpack.c.b16 %v406, %v404
      %v429 = vpack.c.b16 %v409, %v407
      %v430 = vpack.c.b16 %v410, %v408
      %v431 = vpack.c.b16 %v413, %v411
      %v432 = vpack.c.b16 %v414, %v412
      %v433 = vpack.c.b16 %v417, %v415
      %v434 = vpack.c.b16 %v418, %v416
      %451 = vmatprep.subr.bf16.mxu0 0
      %452 = vmatpush1.bf16.msra.mxu0 %v323
      %453 = vmatprep.subr.bf16.mxu0 0
      %454 = vmatpush1.bf16.msra.mxu0 %v324
      %455 = vmatprep.subr.bf16.mxu0 0
      %456 = vmatpush1.bf16.msra.mxu0 %v325
      %457 = vmatprep.subr.bf16.mxu0 0
      %458 = vmatpush1.bf16.msra.mxu0 %v326
      %459 = vmatprep.subr.bf16.mxu0 0
      %460 = vmatpush1.bf16.msra.mxu0 %v327
      %461 = vmatprep.subr.bf16.mxu0 0
      %462 = vmatpush1.bf16.msra.mxu0 %v328
      %463 = vmatprep.subr.bf16.mxu0 0
      %464 = vmatpush1.bf16.msra.mxu0 %v329
      %465 = vmatprep.subr.bf16.mxu0 0
      %466 = vmatpush1.bf16.msra.mxu0 %v330
      %467 = vmatprep.subr.bf16.mxu0 0
      %468 = vmatpush1.bf16.msra.mxu0 %v331
      %469 = vmatprep.subr.bf16.mxu0 0
      %470 = vmatpush1.bf16.msra.mxu0 %v332
      %471 = vmatprep.subr.bf16.mxu0 0
      %472 = vmatpush1.bf16.msra.mxu0 %v333
      %473 = vmatprep.subr.bf16.mxu0 0
      %474 = vmatpush1.bf16.msra.mxu0 %v334
      %475 = vmatprep.subr.bf16.mxu0 0
      %476 = vmatpush1.bf16.msra.mxu0 %v335
      %477 = vmatprep.subr.bf16.mxu0 0
      %478 = vmatpush1.bf16.msra.mxu0 %v336
      %479 = vmatprep.subr.bf16.mxu0 0
      %480 = vmatpush1.bf16.msra.mxu0 %v337
      %481 = vmatprep.subr.bf16.mxu0 0
      %482 = vmatpush1.bf16.msra.mxu0 %v338
      %483 = vmatprep.mubr.bf16.mxu0 %v420
      %484 = vmatmul.mubr.bf16.gmra.mrb[0].mxu0 %v419
      %v485 = vpop.f32.mrb[0].mxu0
      %v486 = vadd.f32 0.0, %v485
      %v487 = vpop.f32.mrb[0].mxu0
      %v488 = vpop.f32.mrb[0].mxu0
      %v489 = vadd.f32 0.0, %v488
      %v490 = vpop.f32.mrb[0].mxu0
      %491 = vmatprep.mubr.bf16.mxu0 %v422
      %492 = vmatmul.mubr.bf16.gmra.mrb[0].mxu0 %v421
      %v493 = vpop.f32.mrb[0].mxu0
      %v494 = vadd.f32 0.0, %v493
      %v495 = vpop.f32.mrb[0].mxu0
      %v496 = vpop.f32.mrb[0].mxu0
      %v497 = vadd.f32 0.0, %v496
      %v498 = vpop.f32.mrb[0].mxu0
      %499 = vmatprep.mubr.bf16.mxu0 %v424
      %500 = vmatmul.mubr.bf16.gmra.mrb[0].mxu0 %v423
      %v501 = vpop.f32.mrb[0].mxu0
      %v502 = vadd.f32 0.0, %v501
      %v503 = vpop.f32.mrb[0].mxu0
      %v504 = vpop.f32.mrb[0].mxu0
      %v505 = vadd.f32 0.0, %v504
      %v506 = vpop.f32.mrb[0].mxu0
      %507 = vmatprep.mubr.bf16.mxu0 %v426
      %508 = vmatmul.mubr.bf16.gmra.mrb[0].mxu0 %v425
      %v509 = vpop.f32.mrb[0].mxu0
      %v510 = vadd.f32 0.0, %v509
      %v511 = vpop.f32.mrb[0].mxu0
      %v512 = vpop.f32.mrb[0].mxu0
      %v513 = vadd.f32 0.0, %v512
      %v514 = vpop.f32.mrb[0].mxu0
      %515 = vmatprep.mubr.bf16.mxu0 %v428
      %516 = vmatmul.mubr.bf16.gmra.mrb[0].mxu0 %v427
      %v517 = vpop.f32.mrb[0].mxu0
      %v518 = vadd.f32 0.0, %v517
      %v519 = vpop.f32.mrb[0].mxu0
      %v520 = vpop.f32.mrb[0].mxu0
      %v521 = vadd.f32 0.0, %v520
      %v522 = vpop.f32.mrb[0].mxu0
      %523 = vmatprep.mubr.bf16.mxu0 %v430
      %524 = vmatmul.mubr.bf16.gmra.mrb[0].mxu0 %v429
      %v525 = vpop.f32.mrb[0].mxu0
      %v526 = vadd.f32 0.0, %v525
      %v527 = vpop.f32.mrb[0].mxu0
      %v528 = vpop.f32.mrb[0].mxu0
      %v529 = vadd.f32 0.0, %v528
      %v530 = vpop.f32.mrb[0].mxu0
      %531 = vmatprep.mubr.bf16.mxu0 %v432
      %532 = vmatmul.mubr.bf16.gmra.mrb[0].mxu0 %v431
      %v533 = vpop.f32.mrb[0].mxu0
      %v534 = vadd.f32 0.0, %v533
      %v535 = vpop.f32.mrb[0].mxu0
      %v536 = vpop.f32.mrb[0].mxu0
      %v537 = vadd.f32 0.0, %v536
      %v538 = vpop.f32.mrb[0].mxu0
      %539 = vmatprep.mubr.bf16.mxu0 %v434
      %540 = vmatmul.mubr.bf16.gmra.mrb[0].mxu0 %v433
      %v541 = vpop.f32.mrb[0].mxu0
      %v542 = vadd.f32 0.0, %v541
      %v543 = vpop.f32.mrb[0].mxu0
      %v544 = vpop.f32.mrb[0].mxu0
      %v545 = vadd.f32 0.0, %v544
      %v546 = vpop.f32.mrb[0].mxu0
      %547 = vdwg.mxu0
      %v548 = vadd.f32 %v339, %v486
      %v549 = vadd.f32 %v340, %v489
      %v550 = vadd.f32 %v341, %v494
      %v551 = vadd.f32 %v342, %v497
      %v552 = vadd.f32 %v343, %v502
      %v553 = vadd.f32 %v344, %v505
      %v554 = vadd.f32 %v345, %v510
      %v555 = vadd.f32 %v346, %v513
      %v556 = vadd.f32 %v347, %v518
      %v557 = vadd.f32 %v348, %v521
      %v558 = vadd.f32 %v349, %v526
      %v559 = vadd.f32 %v350, %v529
      %v560 = vadd.f32 %v351, %v534
      %v561 = vadd.f32 %v352, %v537
      %v562 = vadd.f32 %v353, %v542
      %v563 = vadd.f32 %v354, %v545
      %564 = vst [vmem:[%s260] sm:$0xff] %v548
      %565 = vst [vmem:[%s260 + $0x8] sm:$0xff] %v549
      %566 = vst [vmem:[%s260 + $0x10] sm:$0xff] %v550
      %567 = vst [vmem:[%s260 + $0x18] sm:$0xff] %v551
      %568 = vst [vmem:[%s260 + $0x20] sm:$0xff] %v552
      %569 = vst [vmem:[%s260 + $0x28] sm:$0xff] %v553
      %570 = vst [vmem:[%s260 + $0x30] sm:$0xff] %v554
      %571 = vst [vmem:[%s260 + $0x38] sm:$0xff] %v555
      %572 = vst [vmem:[%s260 + $0x40] sm:$0xff] %v556
      %573 = vst [vmem:[%s260 + $0x48] sm:$0xff] %v557
      %574 = vst [vmem:[%s260 + $0x50] sm:$0xff] %v558
      %575 = vst [vmem:[%s260 + $0x58] sm:$0xff] %v559
      %576 = vst [vmem:[%s260 + $0x60] sm:$0xff] %v560
      %577 = vst [vmem:[%s260 + $0x68] sm:$0xff] %v561
      %578 = vst [vmem:[%s260 + $0x70] sm:$0xff] %v562
      %579 = vst [vmem:[%s260 + $0x78] sm:$0xff] %v563
      // Predicated region
      $region37: #{recsys_gnn_forward.3} parent=31 // pred_check
        %p580 = pneg %p269
      $region38: #{recsys_gnn_forward.3} parent=31 // pred_check_branch
        %582 = sbr.rel (%p580) target = $region40
      $region39: #{recsys_gnn_forward.3} parent=31 // pred_region
        %v583 = vld [vmem:[%s254] sm:$0xff]
        %v584 = vld [vmem:[%s254 + $0x8] sm:$0xff]
        %v585 = vld [vmem:[%s254 + $0x10] sm:$0xff]
        %v586 = vld [vmem:[%s254 + $0x18] sm:$0xff]
        %v587 = vld [vmem:[%s254 + $0x20] sm:$0xff]
        %v588 = vld [vmem:[%s254 + $0x28] sm:$0xff]
        %v589 = vld [vmem:[%s254 + $0x30] sm:$0xff]
        %v590 = vld [vmem:[%s254 + $0x38] sm:$0xff]
        %v591 = vld [vmem:[%s254 + $0x40] sm:$0xff]
        %v592 = vld [vmem:[%s254 + $0x48] sm:$0xff]
        %v593 = vld [vmem:[%s254 + $0x50] sm:$0xff]
        %v594 = vld [vmem:[%s254 + $0x58] sm:$0xff]
        %v595 = vld [vmem:[%s254 + $0x60] sm:$0xff]
        %v596 = vld [vmem:[%s254 + $0x68] sm:$0xff]
        %v597 = vld [vmem:[%s254 + $0x70] sm:$0xff]
        %v598 = vld [vmem:[%s254 + $0x78] sm:$0xff]
        %v599 = vld [vmem:[%s260] sm:$0xff]
        %v600 = vld [vmem:[%s260 + $0x8] sm:$0xff]
        %v601 = vld [vmem:[%s260 + $0x10] sm:$0xff]
        %v602 = vld [vmem:[%s260 + $0x18] sm:$0xff]
        %v603 = vld [vmem:[%s260 + $0x20] sm:$0xff]
        %v604 = vld [vmem:[%s260 + $0x28] sm:$0xff]
        %v605 = vld [vmem:[%s260 + $0x30] sm:$0xff]
        %v606 = vld [vmem:[%s260 + $0x38] sm:$0xff]
        %v607 = vld [vmem:[%s260 + $0x40] sm:$0xff]
        %v608 = vld [vmem:[%s260 + $0x48] sm:$0xff]
        %v609 = vld [vmem:[%s260 + $0x50] sm:$0xff]
        %v610 = vld [vmem:[%s260 + $0x58] sm:$0xff]
        %v611 = vld [vmem:[%s260 + $0x60] sm:$0xff]
        %v612 = vld [vmem:[%s260 + $0x68] sm:$0xff]
        %v613 = vld [vmem:[%s260 + $0x70] sm:$0xff]
        %v614 = vld [vmem:[%s260 + $0x78] sm:$0xff]
        %v615 = vadd.f32 %v583, %v599
        %v616 = vadd.f32 %v584, %v600
        %v617 = vadd.f32 %v585, %v601
        %v618 = vadd.f32 %v586, %v602
        %v619 = vadd.f32 %v587, %v603
        %v620 = vadd.f32 %v588, %v604
        %v621 = vadd.f32 %v589, %v605
        %v622 = vadd.f32 %v590, %v606
        %v623 = vadd.f32 %v591, %v607
        %v624 = vadd.f32 %v592, %v608
        %v625 = vadd.f32 %v593, %v609
        %v626 = vadd.f32 %v594, %v610
        %v627 = vadd.f32 %v595, %v611
        %v628 = vadd.f32 %v596, %v612
        %v629 = vadd.f32 %v597, %v613
        %v630 = vadd.f32 %v598, %v614
        %631 = vst [vmem:[%s266] sm:$0xff] %v615
        %632 = vst [vmem:[%s266 + $0x8] sm:$0xff] %v616
        %633 = vst [vmem:[%s266 + $0x10] sm:$0xff] %v617
        %634 = vst [vmem:[%s266 + $0x18] sm:$0xff] %v618
        %635 = vst [vmem:[%s266 + $0x20] sm:$0xff] %v619
        %636 = vst [vmem:[%s266 + $0x28] sm:$0xff] %v620
        %637 = vst [vmem:[%s266 + $0x30] sm:$0xff] %v621
        %638 = vst [vmem:[%s266 + $0x38] sm:$0xff] %v622
        %639 = vst [vmem:[%s266 + $0x40] sm:$0xff] %v623
        %640 = vst [vmem:[%s266 + $0x48] sm:$0xff] %v624
        %641 = vst [vmem:[%s266 + $0x50] sm:$0xff] %v625
        %642 = vst [vmem:[%s266 + $0x58] sm:$0xff] %v626
        %643 = vst [vmem:[%s266 + $0x60] sm:$0xff] %v627
        %644 = vst [vmem:[%s266 + $0x68] sm:$0xff] %v628
        %645 = vst [vmem:[%s266 + $0x70] sm:$0xff] %v629
        %646 = vst [vmem:[%s266 + $0x78] sm:$0xff] %v630
      $region40: #{recsys_gnn_forward.3} parent=31 // pred_fallthru
        _
      %s647 = smul.u32 16, %s20
      %p648 = scmp.lt.s32.totalorder %s647, 31
      %s649 = scalar_select %p648, %s647, 31
      %s650 = smul.addr %s649, 8
      %s651 = scalar_lea.vmem %s3, %s650
      %s652 = smul.u32 16, %s20
      %p653 = scmp.lt.s32.totalorder %s652, 31
      %s654 = scalar_select %p653, %s652, 31
      %s655 = smul.addr %s654, 8
      %s656 = scalar_lea.vmem %s4, %s655
      // Predicated region
      $region41: #{recsys_gnn_forward.3} parent=31 // pred_check
        %p657 = pneg %p121
      $region42: #{recsys_gnn_forward.3} parent=31 // pred_check_branch
        %659 = sbr.rel (%p657) target = $region44
      $region43: #{recsys_gnn_forward.3} parent=31 // pred_region
        %s660 = smul.u32 16, %s20
      $region44: #{recsys_gnn_forward.3} parent=31 // pred_fallthru
        _
      // Predicated region
      $region45: #{recsys_gnn_forward.3} parent=31 // pred_check
        %p661 = pneg %p147
      $region46: #{recsys_gnn_forward.3} parent=31 // pred_check_branch
        %663 = sbr.rel (%p661) target = $region48
      $region47: #{recsys_gnn_forward.3} parent=31 // pred_region
        %s664 = smul.u32 16, %s20
      $region48: #{recsys_gnn_forward.3} parent=31 // pred_fallthru
        _
    $region32: #{recsys_gnn_forward.3} parent=5 // pred_fallthru
      _
    %p665 = scmp.le.s32.totalorder 2, %s11
    // Predicated region
    $region49: #{recsys_gnn_forward.3} parent=5 // pred_check
      %p666 = pneg %p665
    $region50: #{recsys_gnn_forward.3} parent=5 // pred_check_branch
      %668 = sbr.rel (%p666) target = $region52
    $region51: #{recsys_gnn_forward.3} parent=5 // pred_region
      %s669 = ssub.s32 %s11, 2
      // Predicated region
      $region53: #{recsys_gnn_forward.3} parent=51 // pred_check
        %p670 = pneg %p127
      $region54: #{recsys_gnn_forward.3} parent=51 // pred_check_branch
        %672 = sbr.rel (%p670) target = $region56
      $region55: #{recsys_gnn_forward.3} parent=51 // pred_region
        %s673 = smul.u32 16, %s22
        %p674 = scmp.lt.s32.totalorder %s673, 31
        %s675 = scalar_select %p674, %s673, 31
        %s676 = smul.addr %s675, 8
        %s677 = scalar_lea.vmem %s3, %s676
      $region56: #{recsys_gnn_forward.3} parent=51 // pred_fallthru
        _
      // Predicated region
      $region57: #{recsys_gnn_forward.3} parent=51 // pred_check
        %p678 = pneg %p153
      $region58: #{recsys_gnn_forward.3} parent=51 // pred_check_branch
        %680 = sbr.rel (%p678) target = $region60
      $region59: #{recsys_gnn_forward.3} parent=51 // pred_region
        %s681 = smul.u32 16, %s22
        %p682 = scmp.lt.s32.totalorder %s681, 31
        %s683 = scalar_select %p682, %s681, 31
        %s684 = smul.addr %s683, 8
        %s685 = scalar_lea.vmem %s4, %s684
      $region60: #{recsys_gnn_forward.3} parent=51 // pred_fallthru
        _
    $region52: #{recsys_gnn_forward.3} parent=5 // pred_fallthru
      _
  $region6: #{recsys_gnn_forward.3} parent=0 // loop_footer
    %s15 = sadd.s32 1, %s11
  $region7: #{recsys_gnn_forward.3} parent=0 // loop_footer_branch
    %10 = sbr.rel target = $region3
  $region8: #{recsys_gnn_forward.3} parent=0 // loop_exit
    _

// kernel: recsys_gnn_forward.5
$region0: #{recsys_gnn_forward.5}
  #allocation0 [shape = 'u32[]', space=smem, size = 0x4, offset = 0x4, fixed_abs, tag = 'smem constant byte address 0x4 - core index']
  #allocation1 [shape = 'u32[144,128]{1,0:T(1,128)}', space=vmem, size = 0x12000, scoped, tag = 'internal scratch']
  %s0 = inlined_call_operand.vmem [shape: bf16[256,256], index: 0, kind: input, shape index: {}]
  %s1 = inlined_call_operand.vmem [shape: f32[256,128], index: 1, kind: input, shape index: {}]
  %s2 = inlined_call_operand.vmem [shape: f32[256,128], index: 2, kind: input, shape index: {}]
  %s3 = inlined_call_operand.hbm [shape: f32[256,128], index: 3, kind: output, shape index: {0}]
  %s4 = inlined_call_operand.vmem [shape: f32[256,128], index: 4, kind: output, shape index: {1}]
  %5 = xla_tuple %s3, %s4
  %s6 = sld [smem:[#allocation0]]
  $region61: #{recsys_gnn_forward.5} parent=0
    _
  %s8 = ssub.s32 1, %s6
  %s9 = scalar_select 0, %s8, %s6
  $region1: #{recsys_gnn_forward.5} parent=0
    #allocation2 [shape = 'u8[131072]{0}', space=vmem, size = 0x20000, scoped, tag = 'output window, operand 0']
    #allocation3 [shape = 's32[2]{0}', space=sflag, size = 0x8, scoped, tag = 'scoped memory for recsys_gnn_forward.5']
    %10 = vsyncpa [#allocation3], 0
    %s11 = scalar_lea.sflag [#allocation3], 1
    %12 = vsyncpa %s11, 0
    loop: start=0, step=1, limit=4
    $region2: #{recsys_gnn_forward.5} parent=1 // loop_pre_header
      _
    $region3: #{recsys_gnn_forward.5} parent=1 // loop_header
      %s14 = sphi 0, %s18
      %p15 = scmp.ge.s32.totalorder %s14, 4
      %s21 = sphi 0, %s33
      %s22 = sphi 0, %s29
      %s23 = sphi 0, %s21
      %s24 = sphi 0, %s22
      %s25 = sphi 0, %s23
      %s26 = sphi 0, %s24
      %s38 = sphi 0, %s40
      %s41 = sphi 0, %s38
      %s42 = sphi 0, %s41
      %s58 = sphi 0, %s42
      %s62 = sphi 0, %s62
      %s64 = sphi 0, %s62
      %s65 = sphi 0, %s64
      %s79 = sphi 0, %s65
      %s85 = sphi 0, %s87
      %s88 = sphi 0, %s85
      %s89 = sphi 0, %s88
      %s105 = sphi 0, %s89
      %s111 = sphi 0, %s113
      %s114 = sphi 0, %s111
      %s115 = sphi 0, %s114
      %s131 = sphi 0, %s115
      %s137 = sphi 0, %s139
      %s140 = sphi 0, %s137
      %s141 = sphi 0, %s140
      %s157 = sphi 0, %s141
    $region4: #{recsys_gnn_forward.5} parent=1 // loop_header_branch
      %17 = sbr.rel (%p15) target = $region8
    $region5: #{recsys_gnn_forward.5} parent=1 // loop_body
      %s19 = ssub.s32 %s14, 1
      %s20 = ssub.s32 %s14, 2
      %s27 = sadd.s32 1, %s22
      %p28 = scmp.ge.s32.totalorder %s27, 1
      %s29 = scalar_select %p28, 0, %s27
      %s30 = sadd.s32 1, %s21
      %s31 = scalar_select %p28, %s30, %s21
      %p32 = scmp.ge.s32.totalorder %s31, 2
      %s33 = scalar_select %p32, 0, %s31
      %s34 = ssub.s32 %s21, %s33
      %s35 = ssub.s32 %s22, %s29
      %s36 = sor.u32 %s34, %s35
      %p37 = scmp.eq.s32.totalorder %s36, 0
      %s39 = sadd.s32 %s38, 1
      %s40 = scalar_select %p37, %s38, %s39
      %p43 = pneg %p37
      %p44 = scmp.eq.s32.totalorder %s14, 1
      %p45 = por %p43, %p44
      %p46 = scmp.ne.s32.totalorder %s38, %s41
      %p47 = scmp.eq.s32.totalorder %s14, 0
      %p48 = por %p46, %p47
      %p49 = scmp.ne.s32.totalorder %s38, %s41
      %p50 = scmp.eq.s32.totalorder %s19, 1
      %p51 = por %p49, %p50
      %p52 = scmp.ne.s32.totalorder %s41, %s42
      %p53 = scmp.eq.s32.totalorder %s19, 0
      %p54 = por %p52, %p53
      %p55 = scmp.ne.s32.totalorder %s41, %s42
      %p56 = scmp.eq.s32.totalorder %s20, 1
      %p57 = por %p55, %p56
      %p59 = scmp.ne.s32.totalorder %s42, %s58
      %p60 = scmp.eq.s32.totalorder %s20, 0
      %p61 = por %p59, %p60
      %s63 = sadd.s32 %s62, 1
      %p66 = scmp.eq.s32.totalorder %s14, 1
      %p67 = scmp.ne.s32.totalorder %s62, %s64
      %p68 = scmp.eq.s32.totalorder %s14, 0
      %p69 = por %p67, %p68
      %p70 = scmp.ne.s32.totalorder %s62, %s64
      %p71 = scmp.eq.s32.totalorder %s19, 1
      %p72 = por %p70, %p71
      %p73 = scmp.ne.s32.totalorder %s64, %s65
      %p74 = scmp.eq.s32.totalorder %s19, 0
      %p75 = por %p73, %p74
      %p76 = scmp.ne.s32.totalorder %s64, %s65
      %p77 = scmp.eq.s32.totalorder %s20, 1
      %p78 = por %p76, %p77
      %p80 = scmp.ne.s32.totalorder %s65, %s79
      %p81 = scmp.eq.s32.totalorder %s20, 0
      %p82 = por %p80, %p81
      %s83 = ssub.s32 %s21, %s33
      %p84 = scmp.eq.s32.totalorder %s83, 0
      %s86 = sadd.s32 %s85, 1
      %s87 = scalar_select %p84, %s85, %s86
      %p90 = pneg %p84
      %p91 = scmp.eq.s32.totalorder %s14, 1
      %p92 = por %p90, %p91
      %p93 = scmp.ne.s32.totalorder %s85, %s88
      %p94 = scmp.eq.s32.totalorder %s14, 0
      %p95 = por %p93, %p94
      %p96 = scmp.ne.s32.totalorder %s85, %s88
      %p97 = scmp.eq.s32.totalorder %s19, 1
      %p98 = por %p96, %p97
      %p99 = scmp.ne.s32.totalorder %s88, %s89
      %p100 = scmp.eq.s32.totalorder %s19, 0
      %p101 = por %p99, %p100
      %p102 = scmp.ne.s32.totalorder %s88, %s89
      %p103 = scmp.eq.s32.totalorder %s20, 1
      %p104 = por %p102, %p103
      %p106 = scmp.ne.s32.totalorder %s89, %s105
      %p107 = scmp.eq.s32.totalorder %s20, 0
      %p108 = por %p106, %p107
      %s109 = ssub.s32 %s21, %s33
      %p110 = scmp.eq.s32.totalorder %s109, 0
      %s112 = sadd.s32 %s111, 1
      %s113 = scalar_select %p110, %s111, %s112
      %p116 = pneg %p110
      %p117 = scmp.eq.s32.totalorder %s14, 1
      %p118 = por %p116, %p117
      %p119 = scmp.ne.s32.totalorder %s111, %s114
      %p120 = scmp.eq.s32.totalorder %s14, 0
      %p121 = por %p119, %p120
      %p122 = scmp.ne.s32.totalorder %s111, %s114
      %p123 = scmp.eq.s32.totalorder %s19, 1
      %p124 = por %p122, %p123
      %p125 = scmp.ne.s32.totalorder %s114, %s115
      %p126 = scmp.eq.s32.totalorder %s19, 0
      %p127 = por %p125, %p126
      %p128 = scmp.ne.s32.totalorder %s114, %s115
      %p129 = scmp.eq.s32.totalorder %s20, 1
      %p130 = por %p128, %p129
      %p132 = scmp.ne.s32.totalorder %s115, %s131
      %p133 = scmp.eq.s32.totalorder %s20, 0
      %p134 = por %p132, %p133
      %s135 = ssub.s32 %s21, %s33
      %p136 = scmp.eq.s32.totalorder %s135, 0
      %s138 = sadd.s32 %s137, 1
      %s139 = scalar_select %p136, %s137, %s138
      %p142 = pneg %p136
      %p143 = scmp.eq.s32.totalorder %s14, 1
      %p144 = por %p142, %p143
      %p145 = scmp.ne.s32.totalorder %s137, %s140
      %p146 = scmp.eq.s32.totalorder %s14, 0
      %p147 = por %p145, %p146
      %p148 = scmp.ne.s32.totalorder %s137, %s140
      %p149 = scmp.eq.s32.totalorder %s19, 1
      %p150 = por %p148, %p149
      %p151 = scmp.ne.s32.totalorder %s140, %s141
      %p152 = scmp.eq.s32.totalorder %s19, 0
      %p153 = por %p151, %p152
      %p154 = scmp.ne.s32.totalorder %s140, %s141
      %p155 = scmp.eq.s32.totalorder %s20, 1
      %p156 = por %p154, %p155
      %p158 = scmp.ne.s32.totalorder %s141, %s157
      %p159 = scmp.eq.s32.totalorder %s20, 0
      %p160 = por %p158, %p159
      %p161 = scmp.le.s32.totalorder 1, %s14
      %p162 = scmp.lt.s32.totalorder %s14, 3
      %p163 = pnand %p161, %p162
      %p164 = pneg %p163
      // Predicated region
      $region9: #{recsys_gnn_forward.5} parent=5 // pred_check
        _
      $region10: #{recsys_gnn_forward.5} parent=5 // pred_check_branch
        %166 = sbr.rel (%p163) target = $region12
      $region11: #{recsys_gnn_forward.5} parent=5 // pred_region
        %s167 = ssub.s32 %s14, 1
        // Predicated region
        $region13: #{recsys_gnn_forward.5} parent=11 // pred_check
          %p168 = pneg %p75
        $region14: #{recsys_gnn_forward.5} parent=11 // pred_check_branch
          %170 = sbr.rel (%p168) target = $region16
        $region15: #{recsys_gnn_forward.5} parent=11 // pred_region
          _
        $region16: #{recsys_gnn_forward.5} parent=11 // pred_fallthru
          _
      $region12: #{recsys_gnn_forward.5} parent=5 // pred_fallthru
        _
      %p171 = scmp.lt.s32.totalorder %s14, 2
      // Predicated region
      $region17: #{recsys_gnn_forward.5} parent=5 // pred_check
        %p172 = pneg %p171
      $region18: #{recsys_gnn_forward.5} parent=5 // pred_check_branch
        %174 = sbr.rel (%p172) target = $region20
      $region19: #{recsys_gnn_forward.5} parent=5 // pred_region
        // Predicated region
        $region21: #{recsys_gnn_forward.5} parent=19 // pred_check
          %p175 = pneg %p48
        $region22: #{recsys_gnn_forward.5} parent=19 // pred_check_branch
          %177 = sbr.rel (%p175) target = $region24
        $region23: #{recsys_gnn_forward.5} parent=19 // pred_region
          %s178 = smul.u32 16, %s21
          %s179 = smul.u32 2, %s22
          %p180 = scmp.lt.s32.totalorder %s178, 31
          %s181 = scalar_select %p180, %s178, 31
          %p182 = scmp.lt.s32.totalorder %s179, 1
          %s183 = scalar_select %p182, %s179, 1
          %s184 = smul.addr %s181, 2
          %s185 = sadd.s32 %s183, %s184
          %s186 = smul.addr %s185, 4
          %s187 = scalar_lea.vmem %s0, %s186
          %s188 = smul.u32 16, %s21
          %s189 = smul.u32 2, %s22
        $region24: #{recsys_gnn_forward.5} parent=19 // pred_fallthru
          _
        // Predicated region
        $region25: #{recsys_gnn_forward.5} parent=19 // pred_check
          %p190 = pneg %p95
        $region26: #{recsys_gnn_forward.5} parent=19 // pred_check_branch
          %192 = sbr.rel (%p190) target = $region28
        $region27: #{recsys_gnn_forward.5} parent=19 // pred_region
          %s193 = smul.u32 16, %s21
          %p194 = scmp.lt.s32.totalorder %s193, 31
          %s195 = scalar_select %p194, %s193, 31
          %s196 = smul.addr %s195, 8
          %s197 = scalar_lea.vmem %s2, %s196
          %s198 = smul.u32 16, %s21
        $region28: #{recsys_gnn_forward.5} parent=19 // pred_fallthru
          _
      $region20: #{recsys_gnn_forward.5} parent=5 // pred_fallthru
        _
      %p199 = scmp.le.s32.totalorder 1, %s14
      %p200 = scmp.lt.s32.totalorder %s14, 3
      %p201 = pnand %p199, %p200
      %p202 = pneg %p201
      // Predicated region
      $region29: #{recsys_gnn_forward.5} parent=5 // pred_check
        _
      $region30: #{recsys_gnn_forward.5} parent=5 // pred_check_branch
        %204 = sbr.rel (%p201) target = $region32
      $region31: #{recsys_gnn_forward.5} parent=5 // pred_region
        %s205 = ssub.s32 %s14, 1
        %s206 = smul.u32 16, %s23
        %s207 = smul.u32 2, %s24
        %p208 = scmp.lt.s32.totalorder %s206, 31
        %s209 = scalar_select %p208, %s206, 31
        %p210 = scmp.lt.s32.totalorder %s207, 1
        %s211 = scalar_select %p210, %s207, 1
        %s212 = smul.addr %s209, 2
        %s213 = sadd.s32 %s211, %s212
        %s214 = smul.addr %s213, 4
        %s215 = scalar_lea.vmem %s0, %s214
        %p216 = pneg %p54
        %p217 = pneg %p51
        %p218 = pneg %p75
        %p219 = pneg %p72
        %s220 = smul.u32 16, %s23
        %p221 = scmp.lt.s32.totalorder %s220, 31
        %s222 = scalar_select %p221, %s220, 31
        %s223 = smul.addr %s222, 8
        %s224 = scalar_lea.vmem %s2, %s223
        %p225 = pneg %p101
        %p226 = pneg %p98
        %p227 = pneg %p127
        %p228 = pneg %p124
        %s229 = sand.u32 %s114, 1
        %s230 = scalar_lea.sflag [#allocation3], %s229
        %s231 = sand.u32 %s114, 1
        %s232 = smul.addr %s231, 128
        %s233 = scalar_lea.vmem [#allocation2], %s232
        %p234 = pneg %p153
        %p235 = pneg %p150
        %s236 = smul.u32 16, %s23
        %p237 = scmp.lt.s32.totalorder %s236, 31
        %s238 = scalar_select %p237, %s236, 31
        %s239 = smul.addr %s238, 8
        %s240 = scalar_lea.vmem %s4, %s239
        %s241 = smul.u32 16, %s23
        %s242 = smul.u32 2, %s24
        %p243 = scmp.lt.s32.totalorder %s241, 31
        %s244 = scalar_select %p243, %s241, 31
        %p245 = scmp.lt.s32.totalorder %s242, 1
        %s246 = scalar_select %p245, %s242, 1
        %s247 = smul.addr %s244, 2
        %s248 = sadd.s32 %s246, %s247
        %s249 = smul.addr %s248, 4
        %s250 = scalar_lea.vmem %s0, %s249
        %s251 = smul.u32 16, %s23
        %s252 = smul.u32 2, %s24
        %s253 = smul.u32 16, %s23
        %p254 = scmp.lt.s32.totalorder %s253, 31
        %s255 = scalar_select %p254, %s253, 31
        %s256 = smul.addr %s255, 8
        %s257 = scalar_lea.vmem %s2, %s256
        %s258 = smul.u32 16, %s23
        %s259 = smul.u32 16, %s23
        %s260 = smul.u32 16, %s23
        %p261 = scmp.lt.s32.totalorder %s260, 31
        %s262 = scalar_select %p261, %s260, 31
        %s263 = smul.addr %s262, 8
        %s264 = scalar_lea.vmem %s4, %s263
        %s265 = smul.u32 16, %s23
        %p267 = scmp.eq.s32.totalorder %s24, 0
        // Predicated region
        $region33: #{recsys_gnn_forward.5} parent=31 // pred_check
          %p268 = pneg %p267
        $region34: #{recsys_gnn_forward.5} parent=31 // pred_check_branch
          %270 = sbr.rel (%p268) target = $region36
        $region35: #{recsys_gnn_forward.5} parent=31 // pred_region
          %271 = vst [vmem:[%s233] sm:$0xff] 0.0
          %272 = vst [vmem:[%s233 + $0x8] sm:$0xff] 0.0
          %273 = vst [vmem:[%s233 + $0x10] sm:$0xff] 0.0
          %274 = vst [vmem:[%s233 + $0x18] sm:$0xff] 0.0
          %275 = vst [vmem:[%s233 + $0x20] sm:$0xff] 0.0
          %276 = vst [vmem:[%s233 + $0x28] sm:$0xff] 0.0
          %277 = vst [vmem:[%s233 + $0x30] sm:$0xff] 0.0
          %278 = vst [vmem:[%s233 + $0x38] sm:$0xff] 0.0
          %279 = vst [vmem:[%s233 + $0x40] sm:$0xff] 0.0
          %280 = vst [vmem:[%s233 + $0x48] sm:$0xff] 0.0
          %281 = vst [vmem:[%s233 + $0x50] sm:$0xff] 0.0
          %282 = vst [vmem:[%s233 + $0x58] sm:$0xff] 0.0
          %283 = vst [vmem:[%s233 + $0x60] sm:$0xff] 0.0
          %284 = vst [vmem:[%s233 + $0x68] sm:$0xff] 0.0
          %285 = vst [vmem:[%s233 + $0x70] sm:$0xff] 0.0
          %286 = vst [vmem:[%s233 + $0x78] sm:$0xff] 0.0
        $region36: #{recsys_gnn_forward.5} parent=31 // pred_fallthru
          _
        %s287 = smul.u32 %s24, 256
        %s288 = scalar_lea.vmem %s1, %s287
        %v289 = vld [vmem:[%s288] sm:$0xff]
        %v290 = vld [vmem:[%s288 + $0x8] sm:$0xff]
        %v291 = vld [vmem:[%s288 + $0x10] sm:$0xff]
        %v292 = vld [vmem:[%s288 + $0x18] sm:$0xff]
        %v293 = vld [vmem:[%s288 + $0x20] sm:$0xff]
        %v294 = vld [vmem:[%s288 + $0x28] sm:$0xff]
        %v295 = vld [vmem:[%s288 + $0x30] sm:$0xff]
        %v296 = vld [vmem:[%s288 + $0x38] sm:$0xff]
        %v297 = vld [vmem:[%s288 + $0x40] sm:$0xff]
        %v298 = vld [vmem:[%s288 + $0x48] sm:$0xff]
        %v299 = vld [vmem:[%s288 + $0x50] sm:$0xff]
        %v300 = vld [vmem:[%s288 + $0x58] sm:$0xff]
        %v301 = vld [vmem:[%s288 + $0x60] sm:$0xff]
        %v302 = vld [vmem:[%s288 + $0x68] sm:$0xff]
        %v303 = vld [vmem:[%s288 + $0x70] sm:$0xff]
        %v304 = vld [vmem:[%s288 + $0x78] sm:$0xff]
        %v305 = vld [vmem:[%s288 + $0x80] sm:$0xff]
        %v306 = vld [vmem:[%s288 + $0x88] sm:$0xff]
        %v307 = vld [vmem:[%s288 + $0x90] sm:$0xff]
        %v308 = vld [vmem:[%s288 + $0x98] sm:$0xff]
        %v309 = vld [vmem:[%s288 + $0xa0] sm:$0xff]
        %v310 = vld [vmem:[%s288 + $0xa8] sm:$0xff]
        %v311 = vld [vmem:[%s288 + $0xb0] sm:$0xff]
        %v312 = vld [vmem:[%s288 + $0xb8] sm:$0xff]
        %v313 = vld [vmem:[%s288 + $0xc0] sm:$0xff]
        %v314 = vld [vmem:[%s288 + $0xc8] sm:$0xff]
        %v315 = vld [vmem:[%s288 + $0xd0] sm:$0xff]
        %v316 = vld [vmem:[%s288 + $0xd8] sm:$0xff]
        %v317 = vld [vmem:[%s288 + $0xe0] sm:$0xff]
        %v318 = vld [vmem:[%s288 + $0xe8] sm:$0xff]
        %v319 = vld [vmem:[%s288 + $0xf0] sm:$0xff]
        %v320 = vld [vmem:[%s288 + $0xf8] sm:$0xff]
        %v321 = vpack.c.bf16 %v290, %v289
        %v322 = vpack.c.bf16 %v292, %v291
        %v323 = vpack.c.bf16 %v294, %v293
        %v324 = vpack.c.bf16 %v296, %v295
        %v325 = vpack.c.bf16 %v298, %v297
        %v326 = vpack.c.bf16 %v300, %v299
        %v327 = vpack.c.bf16 %v302, %v301
        %v328 = vpack.c.bf16 %v304, %v303
        %v329 = vpack.c.bf16 %v306, %v305
        %v330 = vpack.c.bf16 %v308, %v307
        %v331 = vpack.c.bf16 %v310, %v309
        %v332 = vpack.c.bf16 %v312, %v311
        %v333 = vpack.c.bf16 %v314, %v313
        %v334 = vpack.c.bf16 %v316, %v315
        %v335 = vpack.c.bf16 %v318, %v317
        %v336 = vpack.c.bf16 %v320, %v319
        %v337 = vld [vmem:[%s233] sm:$0xff]
        %v338 = vld [vmem:[%s233 + $0x8] sm:$0xff]
        %v339 = vld [vmem:[%s233 + $0x10] sm:$0xff]
        %v340 = vld [vmem:[%s233 + $0x18] sm:$0xff]
        %v341 = vld [vmem:[%s233 + $0x20] sm:$0xff]
        %v342 = vld [vmem:[%s233 + $0x28] sm:$0xff]
        %v343 = vld [vmem:[%s233 + $0x30] sm:$0xff]
        %v344 = vld [vmem:[%s233 + $0x38] sm:$0xff]
        %v345 = vld [vmem:[%s233 + $0x40] sm:$0xff]
        %v346 = vld [vmem:[%s233 + $0x48] sm:$0xff]
        %v347 = vld [vmem:[%s233 + $0x50] sm:$0xff]
        %v348 = vld [vmem:[%s233 + $0x58] sm:$0xff]
        %v349 = vld [vmem:[%s233 + $0x60] sm:$0xff]
        %v350 = vld [vmem:[%s233 + $0x68] sm:$0xff]
        %v351 = vld [vmem:[%s233 + $0x70] sm:$0xff]
        %v352 = vld [vmem:[%s233 + $0x78] sm:$0xff]
        %v353 = vld [vmem:[%s250] sm:$0xff]
        %v354 = vld [vmem:[%s250 + $0x8] sm:$0xff]
        %v355 = vld [vmem:[%s250 + $0x10] sm:$0xff]
        %v356 = vld [vmem:[%s250 + $0x18] sm:$0xff]
        %v357 = vld [vmem:[%s250 + $0x20] sm:$0xff]
        %v358 = vld [vmem:[%s250 + $0x28] sm:$0xff]
        %v359 = vld [vmem:[%s250 + $0x30] sm:$0xff]
        %v360 = vld [vmem:[%s250 + $0x38] sm:$0xff]
        %v361 = vld [vmem:[%s250 + $0x40] sm:$0xff]
        %v362 = vld [vmem:[%s250 + $0x48] sm:$0xff]
        %v363 = vld [vmem:[%s250 + $0x50] sm:$0xff]
        %v364 = vld [vmem:[%s250 + $0x58] sm:$0xff]
        %v365 = vld [vmem:[%s250 + $0x60] sm:$0xff]
        %v366 = vld [vmem:[%s250 + $0x68] sm:$0xff]
        %v367 = vld [vmem:[%s250 + $0x70] sm:$0xff]
        %v368 = vld [vmem:[%s250 + $0x78] sm:$0xff]
        %v385 = vunpack.c.l.b16 %v353
        %v386 = vunpack.c.h.b16 %v353
        %v387 = vunpack.c.l.b16 %v354
        %v388 = vunpack.c.h.b16 %v354
        %v389 = vunpack.c.l.b16 %v355
        %v390 = vunpack.c.h.b16 %v355
        %v391 = vunpack.c.l.b16 %v356
        %v392 = vunpack.c.h.b16 %v356
        %v393 = vunpack.c.l.b16 %v357
        %v394 = vunpack.c.h.b16 %v357
        %v395 = vunpack.c.l.b16 %v358
        %v396 = vunpack.c.h.b16 %v358
        %v397 = vunpack.c.l.b16 %v359
        %v398 = vunpack.c.h.b16 %v359
        %v399 = vunpack.c.l.b16 %v360
        %v400 = vunpack.c.h.b16 %v360
        %v401 = vunpack.c.l.b16 %v361
        %v402 = vunpack.c.h.b16 %v361
        %v403 = vunpack.c.l.b16 %v362
        %v404 = vunpack.c.h.b16 %v362
        %v405 = vunpack.c.l.b16 %v363
        %v406 = vunpack.c.h.b16 %v363
        %v407 = vunpack.c.l.b16 %v364
        %v408 = vunpack.c.h.b16 %v364
        %v409 = vunpack.c.l.b16 %v365
        %v410 = vunpack.c.h.b16 %v365
        %v411 = vunpack.c.l.b16 %v366
        %v412 = vunpack.c.h.b16 %v366
        %v413 = vunpack.c.l.b16 %v367
        %v414 = vunpack.c.h.b16 %v367
        %v415 = vunpack.c.l.b16 %v368
        %v416 = vunpack.c.h.b16 %v368
        %v417 = vpack.c.b16 %v387, %v385
        %v418 = vpack.c.b16 %v388, %v386
        %v419 = vpack.c.b16 %v391, %v389
        %v420 = vpack.c.b16 %v392, %v390
        %v421 = vpack.c.b16 %v395, %v393
        %v422 = vpack.c.b16 %v396, %v394
        %v423 = vpack.c.b16 %v399, %v397
        %v424 = vpack.c.b16 %v400, %v398
        %v425 = vpack.c.b16 %v403, %v401
        %v426 = vpack.c.b16 %v404, %v402
        %v427 = vpack.c.b16 %v407, %v405
        %v428 = vpack.c.b16 %v408, %v406
        %v429 = vpack.c.b16 %v411, %v409
        %v430 = vpack.c.b16 %v412, %v410
        %v431 = vpack.c.b16 %v415, %v413
        %v432 = vpack.c.b16 %v416, %v414
        %449 = vmatprep.subr.bf16.mxu0 0
        %450 = vmatpush1.bf16.msra.mxu0 %v321
        %451 = vmatprep.subr.bf16.mxu0 0
        %452 = vmatpush1.bf16.msra.mxu0 %v322
        %453 = vmatprep.subr.bf16.mxu0 0
        %454 = vmatpush1.bf16.msra.mxu0 %v323
        %455 = vmatprep.subr.bf16.mxu0 0
        %456 = vmatpush1.bf16.msra.mxu0 %v324
        %457 = vmatprep.subr.bf16.mxu0 0
        %458 = vmatpush1.bf16.msra.mxu0 %v325
        %459 = vmatprep.subr.bf16.mxu0 0
        %460 = vmatpush1.bf16.msra.mxu0 %v326
        %461 = vmatprep.subr.bf16.mxu0 0
        %462 = vmatpush1.bf16.msra.mxu0 %v327
        %463 = vmatprep.subr.bf16.mxu0 0
        %464 = vmatpush1.bf16.msra.mxu0 %v328
        %465 = vmatprep.subr.bf16.mxu0 0
        %466 = vmatpush1.bf16.msra.mxu0 %v329
        %467 = vmatprep.subr.bf16.mxu0 0
        %468 = vmatpush1.bf16.msra.mxu0 %v330
        %469 = vmatprep.subr.bf16.mxu0 0
        %470 = vmatpush1.bf16.msra.mxu0 %v331
        %471 = vmatprep.subr.bf16.mxu0 0
        %472 = vmatpush1.bf16.msra.mxu0 %v332
        %473 = vmatprep.subr.bf16.mxu0 0
        %474 = vmatpush1.bf16.msra.mxu0 %v333
        %475 = vmatprep.subr.bf16.mxu0 0
        %476 = vmatpush1.bf16.msra.mxu0 %v334
        %477 = vmatprep.subr.bf16.mxu0 0
        %478 = vmatpush1.bf16.msra.mxu0 %v335
        %479 = vmatprep.subr.bf16.mxu0 0
        %480 = vmatpush1.bf16.msra.mxu0 %v336
        %481 = vmatprep.mubr.bf16.mxu0 %v418
        %482 = vmatmul.mubr.bf16.gmra.mrb[0].mxu0 %v417
        %v483 = vpop.f32.mrb[0].mxu0
        %v484 = vadd.f32 0.0, %v483
        %v485 = vpop.f32.mrb[0].mxu0
        %v486 = vpop.f32.mrb[0].mxu0
        %v487 = vadd.f32 0.0, %v486
        %v488 = vpop.f32.mrb[0].mxu0
        %489 = vmatprep.mubr.bf16.mxu0 %v420
        %490 = vmatmul.mubr.bf16.gmra.mrb[0].mxu0 %v419
        %v491 = vpop.f32.mrb[0].mxu0
        %v492 = vadd.f32 0.0, %v491
        %v493 = vpop.f32.mrb[0].mxu0
        %v494 = vpop.f32.mrb[0].mxu0
        %v495 = vadd.f32 0.0, %v494
        %v496 = vpop.f32.mrb[0].mxu0
        %497 = vmatprep.mubr.bf16.mxu0 %v422
        %498 = vmatmul.mubr.bf16.gmra.mrb[0].mxu0 %v421
        %v499 = vpop.f32.mrb[0].mxu0
        %v500 = vadd.f32 0.0, %v499
        %v501 = vpop.f32.mrb[0].mxu0
        %v502 = vpop.f32.mrb[0].mxu0
        %v503 = vadd.f32 0.0, %v502
        %v504 = vpop.f32.mrb[0].mxu0
        %505 = vmatprep.mubr.bf16.mxu0 %v424
        %506 = vmatmul.mubr.bf16.gmra.mrb[0].mxu0 %v423
        %v507 = vpop.f32.mrb[0].mxu0
        %v508 = vadd.f32 0.0, %v507
        %v509 = vpop.f32.mrb[0].mxu0
        %v510 = vpop.f32.mrb[0].mxu0
        %v511 = vadd.f32 0.0, %v510
        %v512 = vpop.f32.mrb[0].mxu0
        %513 = vmatprep.mubr.bf16.mxu0 %v426
        %514 = vmatmul.mubr.bf16.gmra.mrb[0].mxu0 %v425
        %v515 = vpop.f32.mrb[0].mxu0
        %v516 = vadd.f32 0.0, %v515
        %v517 = vpop.f32.mrb[0].mxu0
        %v518 = vpop.f32.mrb[0].mxu0
        %v519 = vadd.f32 0.0, %v518
        %v520 = vpop.f32.mrb[0].mxu0
        %521 = vmatprep.mubr.bf16.mxu0 %v428
        %522 = vmatmul.mubr.bf16.gmra.mrb[0].mxu0 %v427
        %v523 = vpop.f32.mrb[0].mxu0
        %v524 = vadd.f32 0.0, %v523
        %v525 = vpop.f32.mrb[0].mxu0
        %v526 = vpop.f32.mrb[0].mxu0
        %v527 = vadd.f32 0.0, %v526
        %v528 = vpop.f32.mrb[0].mxu0
        %529 = vmatprep.mubr.bf16.mxu0 %v430
        %530 = vmatmul.mubr.bf16.gmra.mrb[0].mxu0 %v429
        %v531 = vpop.f32.mrb[0].mxu0
        %v532 = vadd.f32 0.0, %v531
        %v533 = vpop.f32.mrb[0].mxu0
        %v534 = vpop.f32.mrb[0].mxu0
        %v535 = vadd.f32 0.0, %v534
        %v536 = vpop.f32.mrb[0].mxu0
        %537 = vmatprep.mubr.bf16.mxu0 %v432
        %538 = vmatmul.mubr.bf16.gmra.mrb[0].mxu0 %v431
        %v539 = vpop.f32.mrb[0].mxu0
        %v540 = vadd.f32 0.0, %v539
        %v541 = vpop.f32.mrb[0].mxu0
        %v542 = vpop.f32.mrb[0].mxu0
        %v543 = vadd.f32 0.0, %v542
        %v544 = vpop.f32.mrb[0].mxu0
        %545 = vdwg.mxu0
        %v546 = vadd.f32 %v337, %v484
        %v547 = vadd.f32 %v338, %v487
        %v548 = vadd.f32 %v339, %v492
        %v549 = vadd.f32 %v340, %v495
        %v550 = vadd.f32 %v341, %v500
        %v551 = vadd.f32 %v342, %v503
        %v552 = vadd.f32 %v343, %v508
        %v553 = vadd.f32 %v344, %v511
        %v554 = vadd.f32 %v345, %v516
        %v555 = vadd.f32 %v346, %v519
        %v556 = vadd.f32 %v347, %v524
        %v557 = vadd.f32 %v348, %v527
        %v558 = vadd.f32 %v349, %v532
        %v559 = vadd.f32 %v350, %v535
        %v560 = vadd.f32 %v351, %v540
        %v561 = vadd.f32 %v352, %v543
        %562 = vst [vmem:[%s233] sm:$0xff] %v546
        %563 = vst [vmem:[%s233 + $0x8] sm:$0xff] %v547
        %564 = vst [vmem:[%s233 + $0x10] sm:$0xff] %v548
        %565 = vst [vmem:[%s233 + $0x18] sm:$0xff] %v549
        %566 = vst [vmem:[%s233 + $0x20] sm:$0xff] %v550
        %567 = vst [vmem:[%s233 + $0x28] sm:$0xff] %v551
        %568 = vst [vmem:[%s233 + $0x30] sm:$0xff] %v552
        %569 = vst [vmem:[%s233 + $0x38] sm:$0xff] %v553
        %570 = vst [vmem:[%s233 + $0x40] sm:$0xff] %v554
        %571 = vst [vmem:[%s233 + $0x48] sm:$0xff] %v555
        %572 = vst [vmem:[%s233 + $0x50] sm:$0xff] %v556
        %573 = vst [vmem:[%s233 + $0x58] sm:$0xff] %v557
        %574 = vst [vmem:[%s233 + $0x60] sm:$0xff] %v558
        %575 = vst [vmem:[%s233 + $0x68] sm:$0xff] %v559
        %576 = vst [vmem:[%s233 + $0x70] sm:$0xff] %v560
        %577 = vst [vmem:[%s233 + $0x78] sm:$0xff] %v561
        // Predicated region
        $region37: #{recsys_gnn_forward.5} parent=31 // pred_check
          %p578 = pneg %p267
        $region38: #{recsys_gnn_forward.5} parent=31 // pred_check_branch
          %580 = sbr.rel (%p578) target = $region40
        $region39: #{recsys_gnn_forward.5} parent=31 // pred_region
          %v581 = vld [vmem:[%s257] sm:$0xff]
          %v582 = vld [vmem:[%s257 + $0x8] sm:$0xff]
          %v583 = vld [vmem:[%s257 + $0x10] sm:$0xff]
          %v584 = vld [vmem:[%s257 + $0x18] sm:$0xff]
          %v585 = vld [vmem:[%s257 + $0x20] sm:$0xff]
          %v586 = vld [vmem:[%s257 + $0x28] sm:$0xff]
          %v587 = vld [vmem:[%s257 + $0x30] sm:$0xff]
          %v588 = vld [vmem:[%s257 + $0x38] sm:$0xff]
          %v589 = vld [vmem:[%s257 + $0x40] sm:$0xff]
          %v590 = vld [vmem:[%s257 + $0x48] sm:$0xff]
          %v591 = vld [vmem:[%s257 + $0x50] sm:$0xff]
          %v592 = vld [vmem:[%s257 + $0x58] sm:$0xff]
          %v593 = vld [vmem:[%s257 + $0x60] sm:$0xff]
          %v594 = vld [vmem:[%s257 + $0x68] sm:$0xff]
          %v595 = vld [vmem:[%s257 + $0x70] sm:$0xff]
          %v596 = vld [vmem:[%s257 + $0x78] sm:$0xff]
          %v597 = vld [vmem:[%s233] sm:$0xff]
          %v598 = vld [vmem:[%s233 + $0x8] sm:$0xff]
          %v599 = vld [vmem:[%s233 + $0x10] sm:$0xff]
          %v600 = vld [vmem:[%s233 + $0x18] sm:$0xff]
          %v601 = vld [vmem:[%s233 + $0x20] sm:$0xff]
          %v602 = vld [vmem:[%s233 + $0x28] sm:$0xff]
          %v603 = vld [vmem:[%s233 + $0x30] sm:$0xff]
          %v604 = vld [vmem:[%s233 + $0x38] sm:$0xff]
          %v605 = vld [vmem:[%s233 + $0x40] sm:$0xff]
          %v606 = vld [vmem:[%s233 + $0x48] sm:$0xff]
          %v607 = vld [vmem:[%s233 + $0x50] sm:$0xff]
          %v608 = vld [vmem:[%s233 + $0x58] sm:$0xff]
          %v609 = vld [vmem:[%s233 + $0x60] sm:$0xff]
          %v610 = vld [vmem:[%s233 + $0x68] sm:$0xff]
          %v611 = vld [vmem:[%s233 + $0x70] sm:$0xff]
          %v612 = vld [vmem:[%s233 + $0x78] sm:$0xff]
          %v613 = vadd.f32 %v581, %v597
          %v614 = vadd.f32 %v582, %v598
          %v615 = vadd.f32 %v583, %v599
          %v616 = vadd.f32 %v584, %v600
          %v617 = vadd.f32 %v585, %v601
          %v618 = vadd.f32 %v586, %v602
          %v619 = vadd.f32 %v587, %v603
          %v620 = vadd.f32 %v588, %v604
          %v621 = vadd.f32 %v589, %v605
          %v622 = vadd.f32 %v590, %v606
          %v623 = vadd.f32 %v591, %v607
          %v624 = vadd.f32 %v592, %v608
          %v625 = vadd.f32 %v593, %v609
          %v626 = vadd.f32 %v594, %v610
          %v627 = vadd.f32 %v595, %v611
          %v628 = vadd.f32 %v596, %v612
          %v629 = vmul.f32 %v613, 0.25
          %v630 = vmul.f32 %v614, 0.25
          %v631 = vmul.f32 %v615, 0.25
          %v632 = vmul.f32 %v616, 0.25
          %v633 = vmul.f32 %v617, 0.25
          %v634 = vmul.f32 %v618, 0.25
          %v635 = vmul.f32 %v619, 0.25
          %v636 = vmul.f32 %v620, 0.25
          %v637 = vmul.f32 %v621, 0.25
          %v638 = vmul.f32 %v622, 0.25
          %v639 = vmul.f32 %v623, 0.25
          %v640 = vmul.f32 %v624, 0.25
          %v641 = vmul.f32 %v625, 0.25
          %v642 = vmul.f32 %v626, 0.25
          %v643 = vmul.f32 %v627, 0.25
          %v644 = vmul.f32 %v628, 0.25
          %645 = vst [vmem:[%s264] sm:$0xff] %v629
          %646 = vst [vmem:[%s264 + $0x8] sm:$0xff] %v630
          %647 = vst [vmem:[%s264 + $0x10] sm:$0xff] %v631
          %648 = vst [vmem:[%s264 + $0x18] sm:$0xff] %v632
          %649 = vst [vmem:[%s264 + $0x20] sm:$0xff] %v633
          %650 = vst [vmem:[%s264 + $0x28] sm:$0xff] %v634
          %651 = vst [vmem:[%s264 + $0x30] sm:$0xff] %v635
          %652 = vst [vmem:[%s264 + $0x38] sm:$0xff] %v636
          %653 = vst [vmem:[%s264 + $0x40] sm:$0xff] %v637
          %654 = vst [vmem:[%s264 + $0x48] sm:$0xff] %v638
          %655 = vst [vmem:[%s264 + $0x50] sm:$0xff] %v639
          %656 = vst [vmem:[%s264 + $0x58] sm:$0xff] %v640
          %657 = vst [vmem:[%s264 + $0x60] sm:$0xff] %v641
          %658 = vst [vmem:[%s264 + $0x68] sm:$0xff] %v642
          %659 = vst [vmem:[%s264 + $0x70] sm:$0xff] %v643
          %660 = vst [vmem:[%s264 + $0x78] sm:$0xff] %v644
        $region40: #{recsys_gnn_forward.5} parent=31 // pred_fallthru
          _
        %s661 = sand.u32 %s114, 1
        %s662 = scalar_lea.sflag [#allocation3], %s661
        %s663 = sand.u32 %s114, 1
        %s664 = smul.addr %s663, 128
        %s665 = scalar_lea.vmem [#allocation2], %s664
        %s666 = smul.u32 16, %s23
        %p667 = scmp.lt.s32.totalorder %s666, 31
        %s668 = scalar_select %p667, %s666, 31
        %s669 = smul.addr %s668, 8
        %s670 = scalar_lea.vmem %s4, %s669
        // Predicated region
        $region41: #{recsys_gnn_forward.5} parent=31 // pred_check
          %p671 = pneg %p124
        $region42: #{recsys_gnn_forward.5} parent=31 // pred_check_branch
          %673 = sbr.rel (%p671) target = $region44
        $region43: #{recsys_gnn_forward.5} parent=31 // pred_region
          %s674 = smul.u32 16, %s23
          %s676 = ssub.s32 2048, 2048
          %677 = vsyncadd %s662, %s676
          %s678 = smul.addr %s674, 128
          %s679 = scalar_lea.hbm %s3, %s678
          %s680 = sshll.u32 %s665, 4
          %s681 = int_to_ptr.vmem [resolvable:$true] %s680
          %686 = dma.vmem_to_hbm [thread:$0]  %s681, 2048, %s679, %s662, 128, 128, 8
        $region44: #{recsys_gnn_forward.5} parent=31 // pred_fallthru
          _
        // Predicated region
        $region45: #{recsys_gnn_forward.5} parent=31 // pred_check
          %p687 = pneg %p150
        $region46: #{recsys_gnn_forward.5} parent=31 // pred_check_branch
          %689 = sbr.rel (%p687) target = $region48
        $region47: #{recsys_gnn_forward.5} parent=31 // pred_region
          %s690 = smul.u32 16, %s23
        $region48: #{recsys_gnn_forward.5} parent=31 // pred_fallthru
          _
      $region32: #{recsys_gnn_forward.5} parent=5 // pred_fallthru
        _
      %p691 = scmp.le.s32.totalorder 2, %s14
      // Predicated region
      $region49: #{recsys_gnn_forward.5} parent=5 // pred_check
        %p692 = pneg %p691
      $region50: #{recsys_gnn_forward.5} parent=5 // pred_check_branch
        %694 = sbr.rel (%p692) target = $region52
      $region51: #{recsys_gnn_forward.5} parent=5 // pred_region
        %s695 = ssub.s32 %s14, 2
        // Predicated region
        $region53: #{recsys_gnn_forward.5} parent=51 // pred_check
          %p696 = pneg %p130
        $region54: #{recsys_gnn_forward.5} parent=51 // pred_check_branch
          %698 = sbr.rel (%p696) target = $region56
        $region55: #{recsys_gnn_forward.5} parent=51 // pred_region
          %s699 = sand.u32 %s115, 1
          %s700 = scalar_lea.sflag [#allocation3], %s699
          %s701 = sand.u32 %s115, 1
          %s702 = smul.addr %s701, 128
          %s703 = scalar_lea.vmem [#allocation2], %s702
          %704 = dma.done %s700, 2048
        $region56: #{recsys_gnn_forward.5} parent=51 // pred_fallthru
          _
        // Predicated region
        $region57: #{recsys_gnn_forward.5} parent=51 // pred_check
          %p705 = pneg %p156
        $region58: #{recsys_gnn_forward.5} parent=51 // pred_check_branch
          %707 = sbr.rel (%p705) target = $region60
        $region59: #{recsys_gnn_forward.5} parent=51 // pred_region
          %s708 = smul.u32 16, %s25
          %p709 = scmp.lt.s32.totalorder %s708, 31
          %s710 = scalar_select %p709, %s708, 31
          %s711 = smul.addr %s710, 8
          %s712 = scalar_lea.vmem %s4, %s711
        $region60: #{recsys_gnn_forward.5} parent=51 // pred_fallthru
          _
      $region52: #{recsys_gnn_forward.5} parent=5 // pred_fallthru
        _
    $region6: #{recsys_gnn_forward.5} parent=1 // loop_footer
      %s18 = sadd.s32 1, %s14
    $region7: #{recsys_gnn_forward.5} parent=1 // loop_footer_branch
      %13 = sbr.rel target = $region3
    $region8: #{recsys_gnn_forward.5} parent=1 // loop_exit
      _
    %713 = vsyncpa [#allocation3], 1
    %s714 = scalar_lea.sflag [#allocation3], 1
    %715 = vsyncpa %s714, 1

</llo_original>
